<compile_context>
chip_gen: v5e
topology: v5e:2x2
jax: 0.10.0
libtpu: 0.0.40
codegen_flags: <defaults>
</compile_context>

<pallas_src>
import functools

import numpy as np
import jax
import jax.numpy as jnp
from jax.experimental import pallas as pl
from jax.experimental.pallas import tpu as pltpu


def _cdiv(a, b):
    return -(-a // b)


def _rup(a, b):
    return _cdiv(a, b) * b


def _contrastive_kernel(code_ref, off_ref, x_ref, o_ref, d2_ref, *,
                        s, margin, eps, pad_rows):
    """One (tuple-block b, dim-chunk k) grid step.

    code_ref: (1, lw)  f32 label codes: 1 positive, 0 negative, -1 query/pad
    off_ref:  (1, lw)  i32 column offset within its tuple (0..s-1), resident
    x_ref:    (dc, lw) f32 chunk of dc descriptor rows for lw = tq*s columns
    o_ref:    (1, lw)  f32 per-column loss (0 for query / padding columns)
    d2_ref:   (1, lw)  f32 scratch: running sum over dim chunks of (dif+eps)^2
    """
    k = pl.program_id(1)

    @pl.when(k == 0)
    def _init():
        d2_ref[...] = jnp.zeros_like(d2_ref)

    x = x_ref[...]                        # (dc, lw)
    off = off_ref[...]                    # (1, lw)

    # Segmented broadcast: copy each tuple's query column (offset 0) to all s
    # columns of its tuple with ceil(log2(s)) lane-rolls + selects
    # (Hillis-Steele copy-from-segment-start).  Exact in f32; rolls never pull
    # across a tuple boundary because a column at offset >= shift pulls from
    # offset - shift >= 0 of the same tuple, and wrapped lanes (j < shift) are
    # never selected.
    y = x
    shift = 1
    while shift < s:
        rolled = pltpu.roll(y, shift=shift, axis=1)
        y = jnp.where(off >= shift, rolled, y)
        shift *= 2

    dif = (y - x) + eps                   # (x_q - x_i) + eps
    d2_ref[...] += jnp.sum(dif * dif, axis=0, keepdims=True)

    @pl.when(k == pl.num_programs(1) - 1)
    def _finalize():
        # Zero-padded dim rows contribute exactly eps^2 each; remove them.
        d2 = jnp.maximum(d2_ref[...] - pad_rows * (eps * eps), 0.0)
        d = jnp.sqrt(d2)
        hinge = jnp.maximum(margin - d, 0.0)
        code = code_ref[...]
        contrib = jnp.where(code > 0.5, d2, hinge * hinge)       # 1 -> D^2, 0 -> hinge^2
        o_ref[...] = jnp.where(code > -0.5, 0.5 * contrib, 0.0)  # mask query / padding


def contrastive_loss(x, label, margin=0.7, eps=1e-6):
    """x: (dim, N) float32; label: length-N with values in {-1, 1, 0}.

    `label` must be concrete (host-side): the tuple size S and tuple count are
    derived from it, mirroring the data-dependent indexing in the PyTorch code.
    """
    x = jnp.asarray(x, jnp.float32)
    label_np = np.asarray(label)
    dim, n = x.shape

    nq = int((label_np == -1).sum())              # number of query tuples
    assert nq > 0 and n % nq == 0, "invalid label / column count"
    s = n // nq                                   # images per tuple (q, p, negs...)
    assert s >= 2, "each tuple needs at least (q, p)"
    # Layout checks (see review): queries must sit at column t*s of each tuple,
    # and the non-query labels must be exactly binary {0, 1}.
    assert bool((label_np.reshape(nq, s)[:, 0] == -1).all()), \
        "expected tuples packed as [q, p, n1, ...] with the query first"
    assert set(np.unique(label_np.astype(np.float64))).issubset({-1.0, 0.0, 1.0}), \
        "labels must be in {-1, 0, 1}"

    # Per-generation VMEM capacity (v5e/v6e: 128 MiB, v7x: 64 MiB per core).
    try:
        vmem_cap = int(pltpu.get_tpu_info().vmem_capacity_bytes)
    except Exception:  # conservative fallback
        vmem_cap = 64 << 20

    # --- dim (reduction) axis chunking --------------------------------------
    dc = _rup(dim, 8) if dim <= 512 else 512
    target_block_bytes = min(4 << 20, max(1 << 20, vmem_cap // 24))
    # Shrink the dim chunk if even a 128-tuple block would overshoot the target
    # (only relevant for very large s).
    if 4 * dc * 128 * s > target_block_bytes:
        dc = max(8, (target_block_bytes // (4 * 128 * s)) // 8 * 8)
    dim_pad = _rup(dim, dc)
    nk = dim_pad // dc
    pad_rows = dim_pad - dim

    # --- tuple-block (lane) sizing -------------------------------------------
    # lw = tq*s lanes per block, tq a multiple of 128 (lane-dense blocks of
    # whole tuples), block bytes ~ target, and >= 2 (even) blocks for megacore.
    tq_cap = max(128, (target_block_bytes // (4 * dc * s)) // 128 * 128)
    g = max(2, _cdiv(nq, tq_cap))
    if g % 2:
        g += 1
    tq = min(tq_cap, _rup(_cdiv(nq, g), 128))
    nq_pad = g * tq
    lw = tq * s
    n_pad = nq_pad * s

    # Padded columns are zeros with label code -1 -> contribute exactly 0.
    x_in = x
    if dim_pad != dim or n_pad != n:
        x_in = jnp.pad(x, ((0, dim_pad - dim), (0, n_pad - n)))

    code_np = np.full((1, n_pad), -1.0, dtype=np.float32)
    code_np[0, :n] = label_np.astype(np.float32)
    code = jnp.asarray(code_np)

    # Within-tuple offsets: identical for every block (lw is a whole number of
    # tuples), so a single (1, lw) row is DMA'd once and kept resident.
    off = jnp.asarray(np.tile(np.arange(s, dtype=np.int32), tq)[None, :])

    kernel = functools.partial(_contrastive_kernel, s=int(s),
                               margin=float(margin), eps=float(eps),
                               pad_rows=int(pad_rows))

    # VMEM budget: double-buffered x blocks + in-kernel (dc, lw) temporaries
    # plus slack, clamped to 3/4 of the physical capacity of this generation.
    block_bytes = 4 * dc * lw
    vmem_est = 7 * block_bytes + 64 * lw + (4 << 20)
    vmem_limit = int(min(max(vmem_est, 32 << 20), (vmem_cap * 3) // 4))

    y_cols = pl.pallas_call(
        kernel,
        out_shape=jax.ShapeDtypeStruct((1, n_pad), jnp.float32),
        grid_spec=pltpu.PrefetchScalarGridSpec(
            num_scalar_prefetch=0,
            grid=(g, nk),                                    # (tuple blocks, dim chunks)
            in_specs=[
                pl.BlockSpec((1, lw), lambda b, k: (0, b)),  # label codes
                pl.BlockSpec((1, lw), lambda b, k: (0, 0)),  # tuple offsets (resident)
                pl.BlockSpec((dc, lw), lambda b, k: (k, b)), # x chunk (whole tuples)
            ],
            out_specs=pl.BlockSpec((1, lw), lambda b, k: (0, b)),
            scratch_shapes=[pltpu.VMEM((1, lw), jnp.float32)],
        ),
        compiler_params=pltpu.CompilerParams(
            dimension_semantics=("parallel", "arbitrary"),
            vmem_limit_bytes=vmem_limit),
    )(code, off, x_in)

    # Final scalar reduction of the tiny (1, n_pad) lane-dense loss row.
    # TODO(synk): could be fused as per-block partial sums (low priority per review).
    return jnp.sum(y_cols)


def _reference_loss(x, label, margin=0.7, eps=1e-6):
    # Pure-JAX reference mirroring the PyTorch implementation (sanity check).
    x = jnp.asarray(x, jnp.float32)
    label_np = np.asarray(label)
    dim, n = x.shape
    nq = int((label_np == -1).sum())
    s = n // nq
    x1 = jnp.repeat(x[:, ::s], s - 1, axis=1)
    idx = np.where(label_np != -1)[0]
    x2 = x[:, idx]
    lbl = jnp.asarray(label_np[idx], jnp.float32)
    dif = x1 - x2
    D = jnp.sqrt(jnp.sum((dif + eps) ** 2, axis=0))
    y = 0.5 * lbl * D ** 2 + 0.5 * (1 - lbl) * jnp.maximum(margin - D, 0.0) ** 2
    return jnp.sum(y)


if __name__ == "__main__":
    key = jax.random.PRNGKey(0)
    k1, k2, k3 = jax.random.split(key, 3)

    # Case A: the module docstring example — x (128, 35), tuples (q,p,n1..n5), s=7.
    dim_a, nq_a, s_a = 128, 5, 7
    x_a = jax.random.normal(k1, (dim_a, nq_a * s_a), dtype=jnp.float32)
    label_a = np.array(([-1, 1] + [0] * (s_a - 2)) * nq_a, dtype=np.float32)
    out_a = jax.block_until_ready(contrastive_loss(x_a, label_a, margin=0.7, eps=1e-6))
    ref_a = _reference_loss(x_a, label_a, margin=0.7, eps=1e-6)
    np.testing.assert_allclose(np.asarray(out_a), np.asarray(ref_a), rtol=1e-4, atol=1e-4)

    # Case B: multi-block lane path with a padded tail of tuples (grid = 2 even).
    dim_b, nq_b, s_b = 256, 300, 5
    x_b = jax.random.normal(k2, (dim_b, nq_b * s_b), dtype=jnp.float32)
    label_b = np.array(([-1, 1] + [0] * (s_b - 2)) * nq_b, dtype=np.float32)
    out_b = jax.block_until_ready(contrastive_loss(x_b, label_b, margin=0.7, eps=1e-6))
    ref_b = _reference_loss(x_b, label_b, margin=0.7, eps=1e-6)
    np.testing.assert_allclose(np.asarray(out_b), np.asarray(ref_b), rtol=1e-4, atol=1e-3)

    # Case C: chunked dim reduction (dim > 512 -> 2 dim chunks + padded rows).
    dim_c, nq_c, s_c = 600, 6, 4
    x_c = jax.random.normal(k3, (dim_c, nq_c * s_c), dtype=jnp.float32)
    label_c = np.array(([-1, 1] + [0] * (s_c - 2)) * nq_c, dtype=np.float32)
    out_c = jax.block_until_ready(contrastive_loss(x_c, label_c, margin=0.7, eps=1e-6))
    ref_c = _reference_loss(x_c, label_c, margin=0.7, eps=1e-6)
    np.testing.assert_allclose(np.asarray(out_c), np.asarray(ref_c), rtol=1e-4, atol=1e-3)

    print("KERNEL_OK")
</pallas_src>

<mosaic_0001>
module attributes {stable_mosaic.version = 11 : i64} {
  func.func @_contrastive_kernel(%arg0: i32, %arg1: i32, %arg2: memref<1x896xf32, #tpu.memory_space<vmem>>, %arg3: memref<1x896xi32, #tpu.memory_space<vmem>>, %arg4: memref<128x896xf32, #tpu.memory_space<vmem>>, %arg5: memref<1x896xf32, #tpu.memory_space<vmem>>, %arg6: memref<1x896xf32, #tpu.memory_space<vmem>>) attributes {dimension_semantics = [#tpu.dimension_semantics<parallel>, #tpu.dimension_semantics<arbitrary>], iteration_bounds = array<i64: 2, 1>, scalar_prefetch = 0 : i64, scratch_operands = 1 : i64, tpu.core_type = #tpu.core_type<tc>, window_params = [{transform_indices = @transform_0, window_bounds = array<i64: 1, 896>}, {pipeline_mode = #tpu.pipeline_mode<synchronous>, transform_indices = @transform_1, window_bounds = array<i64: 1, 896>}, {transform_indices = @transform_2, window_bounds = array<i64: 128, 896>}, {transform_indices = @transform_3, window_bounds = array<i64: 1, 896>}]} {
    %c0_i32 = arith.constant 0 : i32
    %0 = arith.cmpi eq, %arg1, %c0_i32 : i32
    %1 = arith.extui %0 : i1 to i32
    %c0_i32_0 = arith.constant 0 : i32
    %2 = arith.cmpi ne, %1, %c0_i32_0 : i32
    scf.if %2 {
      %cst_14 = arith.constant 0.000000e+00 : f32
      %35 = vector.broadcast %cst_14 : f32 to vector<1x896xf32>
      %c0_15 = arith.constant 0 : index
      %c0_16 = arith.constant 0 : index
      %36 = vector.load %arg6[%c0_15, %c0_16] : memref<1x896xf32, #tpu.memory_space<vmem>>, vector<1x896xf32>
      tpu.vector_store %arg6[%c0_15, %c0_16], %35 {strides = array<i32>} : memref<1x896xf32, #tpu.memory_space<vmem>>, vector<1x896xf32>,
    } else {
    }
    %c0 = arith.constant 0 : index
    %c0_1 = arith.constant 0 : index
    %3 = vector.load %arg4[%c0, %c0_1] : memref<128x896xf32, #tpu.memory_space<vmem>>, vector<128x896xf32>
    %c0_2 = arith.constant 0 : index
    %c0_3 = arith.constant 0 : index
    %4 = vector.load %arg3[%c0_2, %c0_3] : memref<1x896xi32, #tpu.memory_space<vmem>>, vector<1x896xi32>
    %c1_i32 = arith.constant 1 : i32
    %5 = tpu.dynamic_rotate %3 by %c1_i32 dim 1 : vector<128x896xf32>, i32 -> vector<128x896xf32>
    %c1_i32_4 = arith.constant 1 : i32
    %6 = vector.broadcast %c1_i32_4 : i32 to vector<1x896xi32>
    %7 = arith.cmpi sge, %4, %6 : vector<1x896xi32>
    %8 = vector.shape_cast %7 : vector<1x896xi1> to vector<1x896xi1>
    %9 = vector.broadcast %8 : vector<1x896xi1> to vector<128x896xi1>
    %10 = arith.select %9, %5, %3 : vector<128x896xi1>, vector<128x896xf32>
    %c2_i32 = arith.constant 2 : i32
    %11 = tpu.dynamic_rotate %10 by %c2_i32 dim 1 : vector<128x896xf32>, i32 -> vector<128x896xf32>
    %c2_i32_5 = arith.constant 2 : i32
    %12 = vector.broadcast %c2_i32_5 : i32 to vector<1x896xi32>
    %13 = arith.cmpi sge, %4, %12 : vector<1x896xi32>
    %14 = vector.shape_cast %13 : vector<1x896xi1> to vector<1x896xi1>
    %15 = vector.broadcast %14 : vector<1x896xi1> to vector<128x896xi1>
    %16 = arith.select %15, %11, %10 : vector<128x896xi1>, vector<128x896xf32>
    %c4_i32 = arith.constant 4 : i32
    %17 = tpu.dynamic_rotate %16 by %c4_i32 dim 1 : vector<128x896xf32>, i32 -> vector<128x896xf32>
    %c4_i32_6 = arith.constant 4 : i32
    %18 = vector.broadcast %c4_i32_6 : i32 to vector<1x896xi32>
    %19 = arith.cmpi sge, %4, %18 : vector<1x896xi32>
    %20 = vector.shape_cast %19 : vector<1x896xi1> to vector<1x896xi1>
    %21 = vector.broadcast %20 : vector<1x896xi1> to vector<128x896xi1>
    %22 = arith.select %21, %17, %16 : vector<128x896xi1>, vector<128x896xf32>
    %23 = arith.subf %22, %3 : vector<128x896xf32>
    %cst = arith.constant 9.99999997E-7 : f32
    %24 = vector.broadcast %cst : f32 to vector<128x896xf32>
    %25 = arith.addf %23, %24 : vector<128x896xf32>
    %c0_7 = arith.constant 0 : index
    %c0_8 = arith.constant 0 : index
    %26 = vector.load %arg6[%c0_7, %c0_8] : memref<1x896xf32, #tpu.memory_space<vmem>>, vector<1x896xf32>
    %27 = arith.mulf %25, %25 : vector<128x896xf32>
    %cst_9 = arith.constant dense<0.000000e+00> : vector<896xf32>
    %28 = vector.multi_reduction <add>, %27, %cst_9 [0] : vector<128x896xf32> to vector<896xf32>
    %29 = vector.shape_cast %28 : vector<896xf32> to vector<1x896xf32>
    %30 = arith.addf %26, %29 : vector<1x896xf32>
    %c0_10 = arith.constant 0 : index
    %c0_11 = arith.constant 0 : index
    %31 = vector.load %arg6[%c0_10, %c0_11] : memref<1x896xf32, #tpu.memory_space<vmem>>, vector<1x896xf32>
    tpu.vector_store %arg6[%c0_10, %c0_11], %30 {strides = array<i32>} : memref<1x896xf32, #tpu.memory_space<vmem>>, vector<1x896xf32>,
    %c0_i32_12 = arith.constant 0 : i32
    %32 = arith.cmpi eq, %arg1, %c0_i32_12 : i32
    %33 = arith.extui %32 : i1 to i32
    %c0_i32_13 = arith.constant 0 : i32
    %34 = arith.cmpi ne, %33, %c0_i32_13 : i32
    scf.if %34 {
      %c0_14 = arith.constant 0 : index
      %c0_15 = arith.constant 0 : index
      %35 = vector.load %arg6[%c0_14, %c0_15] : memref<1x896xf32, #tpu.memory_space<vmem>>, vector<1x896xf32>
      %cst_16 = arith.constant 0.000000e+00 : f32
      %36 = vector.broadcast %cst_16 : f32 to vector<1x896xf32>
      %37 = arith.subf %35, %36 : vector<1x896xf32>
      %cst_17 = arith.constant 0.000000e+00 : f32
      %38 = vector.broadcast %cst_17 : f32 to vector<1x896xf32>
      %39 = arith.maximumf %37, %38 : vector<1x896xf32>
      %40 = math.sqrt %39 : vector<1x896xf32>
      %cst_18 = arith.constant 0.699999988 : f32
      %41 = vector.broadcast %cst_18 : f32 to vector<1x896xf32>
      %42 = arith.subf %41, %40 : vector<1x896xf32>
      %cst_19 = arith.constant 0.000000e+00 : f32
      %43 = vector.broadcast %cst_19 : f32 to vector<1x896xf32>
      %44 = arith.maximumf %42, %43 : vector<1x896xf32>
      %c0_20 = arith.constant 0 : index
      %c0_21 = arith.constant 0 : index
      %45 = vector.load %arg2[%c0_20, %c0_21] : memref<1x896xf32, #tpu.memory_space<vmem>>, vector<1x896xf32>
      %cst_22 = arith.constant 5.000000e-01 : f32
      %46 = vector.broadcast %cst_22 : f32 to vector<1x896xf32>
      %47 = arith.cmpf ogt, %45, %46 : vector<1x896xf32>
      %48 = arith.mulf %44, %44 : vector<1x896xf32>
      %49 = arith.select %47, %39, %48 : vector<1x896xi1>, vector<1x896xf32>
      %cst_23 = arith.constant -5.000000e-01 : f32
      %50 = vector.broadcast %cst_23 : f32 to vector<1x896xf32>
      %51 = arith.cmpf ogt, %45, %50 : vector<1x896xf32>
      %cst_24 = arith.constant 5.000000e-01 : f32
      %52 = vector.broadcast %cst_24 : f32 to vector<1x896xf32>
      %53 = arith.mulf %52, %49 : vector<1x896xf32>
      %cst_25 = arith.constant 0.000000e+00 : f32
      %54 = vector.broadcast %cst_25 : f32 to vector<1x896xf32>
      %55 = arith.select %51, %53, %54 : vector<1x896xi1>, vector<1x896xf32>
      %c0_26 = arith.constant 0 : index
      %c0_27 = arith.constant 0 : index
      %56 = vector.load %arg5[%c0_26, %c0_27] : memref<1x896xf32, #tpu.memory_space<vmem>>, vector<1x896xf32>
      tpu.vector_store %arg5[%c0_26, %c0_27], %55 {strides = array<i32>} : memref<1x896xf32, #tpu.memory_space<vmem>>, vector<1x896xf32>,
    } else {
    }
    return
  }
  func.func @transform_0(%arg0: i32, %arg1: i32) -> (i32, i32) {
    %c0_i32 = arith.constant 0 : i32
    %c0_i32_0 = arith.constant 0 : i32
    return %c0_i32, %arg0 : i32, i32
  }
  func.func @transform_1(%arg0: i32, %arg1: i32) -> (i32, i32) {
    %c0_i32 = arith.constant 0 : i32
    %c0_i32_0 = arith.constant 0 : i32
    %c0_i32_1 = arith.constant 0 : i32
    return %c0_i32, %c0_i32_0 : i32, i32
  }
  func.func @transform_2(%arg0: i32, %arg1: i32) -> (i32, i32) {
    %c0_i32 = arith.constant 0 : i32
    return %arg1, %arg0 : i32, i32
  }
  func.func @transform_3(%arg0: i32, %arg1: i32) -> (i32, i32) {
    %c0_i32 = arith.constant 0 : i32
    %c0_i32_0 = arith.constant 0 : i32
    return %c0_i32, %arg0 : i32, i32
  }
}

</mosaic_0001>

<llo_original>
// kernel: tpu_custom_call.1
$region0: #{tpu_custom_call.1}
  #allocation0 [shape = 'u32[]', space=smem, size = 0x4, offset = 0x4, fixed_abs, tag = 'smem constant byte address 0x4 - core index']
  #allocation1 [shape = 'u32[72,128]{1,0:T(1,128)}', space=vmem, size = 0x9000, scoped, tag = 'internal scratch']
  #allocation2 [shape = 'f32[1,896]{1,0:T(1,128)}', space=vmem, size = 0xe00, scoped, tag = 'scratch operand']
  %s0 = inlined_call_operand.hbm [shape: f32[1,1792], index: 0, kind: input, shape index: {}]
  %s1 = inlined_call_operand.hbm [shape: s32[1,896], index: 1, kind: input, shape index: {}]
  %s2 = inlined_call_operand.hbm [shape: f32[128,1792], index: 2, kind: input, shape index: {}]
  %s3 = inlined_call_operand.hbm [shape: f32[1,1792], index: 3, kind: output, shape index: {}]
  %s4 = sld [smem:[#allocation0]]
  $region65: #{tpu_custom_call.1} parent=0
    _
  %s6 = ssub.s32 1, %s4
  %s7 = scalar_select 0, %s6, %s4
  $region1: #{tpu_custom_call.1} parent=0
    #allocation3 [shape = 'u8[7168]{0}', space=vmem, size = 0x1c00, scoped, tag = 'input window, operand 0']
    #allocation4 [shape = 's32[2]{0}', space=sflag, size = 0x8, scoped, tag = 'scoped memory for tpu_custom_call.1']
    #allocation5 [shape = 's32[2]{0}', space=sflag, size = 0x8, scoped, tag = 'scoped memory for tpu_custom_call.1']
    #allocation6 [shape = 'u8[3584]{0}', space=vmem, size = 0x1000, scoped, tag = 'input window, operand 1, single buffered']
    #allocation7 [shape = 's32[1]{0}', space=sflag, size = 0x4, scoped, tag = 'scoped memory for tpu_custom_call.1']
    #allocation8 [shape = 'u8[917504]{0}', space=vmem, size = 0xe0000, scoped, tag = 'input window, operand 2']
    #allocation9 [shape = 'u8[7168]{0}', space=vmem, size = 0x1c00, scoped, tag = 'output window, operand 0']
    %8 = vsyncpa [#allocation4], 0
    %s9 = scalar_lea.sflag [#allocation4], 1
    %10 = vsyncpa %s9, 0
    %11 = vsyncpa [#allocation7], 0
    %12 = vsyncpa [#allocation5], 0
    %s13 = scalar_lea.sflag [#allocation5], 1
    %14 = vsyncpa %s13, 0
    loop: start=0, step=1, limit=4
    $region2: #{tpu_custom_call.1} parent=1 // loop_pre_header
      _
    $region3: #{tpu_custom_call.1} parent=1 // loop_header
      %s16 = sphi 0, %s20
      %p17 = scmp.ge.s32.totalorder %s16, 4
      %s23 = sphi 0, %s35
      %s24 = sphi 0, %s31
      %s25 = sphi 0, %s23
      %s26 = sphi 0, %s24
      %s27 = sphi 0, %s25
      %s28 = sphi 0, %s26
      %s38 = sphi 0, %s40
      %s41 = sphi 0, %s38
      %s42 = sphi 0, %s41
      %s58 = sphi 0, %s42
      %s62 = sphi 0, %s62
      %s64 = sphi 0, %s62
      %s65 = sphi 0, %s64
      %s79 = sphi 0, %s65
      %s87 = sphi 0, %s89
      %s90 = sphi 0, %s87
      %s91 = sphi 0, %s90
      %s107 = sphi 0, %s91
      %s113 = sphi 0, %s115
      %s116 = sphi 0, %s113
      %s117 = sphi 0, %s116
      %s133 = sphi 0, %s117
    $region4: #{tpu_custom_call.1} parent=1 // loop_header_branch
      %19 = sbr.rel (%p17) target = $region8
    $region5: #{tpu_custom_call.1} parent=1 // loop_body
      %s21 = ssub.s32 %s16, 1
      %s22 = ssub.s32 %s16, 2
      %s29 = sadd.s32 1, %s24
      %p30 = scmp.ge.s32.totalorder %s29, 1
      %s31 = scalar_select %p30, 0, %s29
      %s32 = sadd.s32 1, %s23
      %s33 = scalar_select %p30, %s32, %s23
      %p34 = scmp.ge.s32.totalorder %s33, 2
      %s35 = scalar_select %p34, 0, %s33
      %s36 = ssub.s32 %s23, %s35
      %p37 = scmp.eq.s32.totalorder %s36, 0
      %s39 = sadd.s32 %s38, 1
      %s40 = scalar_select %p37, %s38, %s39
      %p43 = pneg %p37
      %p44 = scmp.eq.s32.totalorder %s16, 1
      %p45 = por %p43, %p44
      %p46 = scmp.ne.s32.totalorder %s38, %s41
      %p47 = scmp.eq.s32.totalorder %s16, 0
      %p48 = por %p46, %p47
      %p49 = scmp.ne.s32.totalorder %s38, %s41
      %p50 = scmp.eq.s32.totalorder %s21, 1
      %p51 = por %p49, %p50
      %p52 = scmp.ne.s32.totalorder %s41, %s42
      %p53 = scmp.eq.s32.totalorder %s21, 0
      %p54 = por %p52, %p53
      %p55 = scmp.ne.s32.totalorder %s41, %s42
      %p56 = scmp.eq.s32.totalorder %s22, 1
      %p57 = por %p55, %p56
      %p59 = scmp.ne.s32.totalorder %s42, %s58
      %p60 = scmp.eq.s32.totalorder %s22, 0
      %p61 = por %p59, %p60
      %s63 = sadd.s32 %s62, 1
      %p66 = scmp.eq.s32.totalorder %s16, 1
      %p67 = scmp.ne.s32.totalorder %s62, %s64
      %p68 = scmp.eq.s32.totalorder %s16, 0
      %p69 = por %p67, %p68
      %p70 = scmp.ne.s32.totalorder %s62, %s64
      %p71 = scmp.eq.s32.totalorder %s21, 1
      %p72 = por %p70, %p71
      %p73 = scmp.ne.s32.totalorder %s64, %s65
      %p74 = scmp.eq.s32.totalorder %s21, 0
      %p75 = por %p73, %p74
      %p76 = scmp.ne.s32.totalorder %s64, %s65
      %p77 = scmp.eq.s32.totalorder %s22, 1
      %p78 = por %p76, %p77
      %p80 = scmp.ne.s32.totalorder %s65, %s79
      %p81 = scmp.eq.s32.totalorder %s22, 0
      %p82 = por %p80, %p81
      %s83 = ssub.s32 %s24, %s31
      %s84 = ssub.s32 %s23, %s35
      %s85 = sor.u32 %s83, %s84
      %p86 = scmp.eq.s32.totalorder %s85, 0
      %s88 = sadd.s32 %s87, 1
      %s89 = scalar_select %p86, %s87, %s88
      %p92 = pneg %p86
      %p93 = scmp.eq.s32.totalorder %s16, 1
      %p94 = por %p92, %p93
      %p95 = scmp.ne.s32.totalorder %s87, %s90
      %p96 = scmp.eq.s32.totalorder %s16, 0
      %p97 = por %p95, %p96
      %p98 = scmp.ne.s32.totalorder %s87, %s90
      %p99 = scmp.eq.s32.totalorder %s21, 1
      %p100 = por %p98, %p99
      %p101 = scmp.ne.s32.totalorder %s90, %s91
      %p102 = scmp.eq.s32.totalorder %s21, 0
      %p103 = por %p101, %p102
      %p104 = scmp.ne.s32.totalorder %s90, %s91
      %p105 = scmp.eq.s32.totalorder %s22, 1
      %p106 = por %p104, %p105
      %p108 = scmp.ne.s32.totalorder %s91, %s107
      %p109 = scmp.eq.s32.totalorder %s22, 0
      %p110 = por %p108, %p109
      %s111 = ssub.s32 %s23, %s35
      %p112 = scmp.eq.s32.totalorder %s111, 0
      %s114 = sadd.s32 %s113, 1
      %s115 = scalar_select %p112, %s113, %s114
      %p118 = pneg %p112
      %p119 = scmp.eq.s32.totalorder %s16, 1
      %p120 = por %p118, %p119
      %p121 = scmp.ne.s32.totalorder %s113, %s116
      %p122 = scmp.eq.s32.totalorder %s16, 0
      %p123 = por %p121, %p122
      %p124 = scmp.ne.s32.totalorder %s113, %s116
      %p125 = scmp.eq.s32.totalorder %s21, 1
      %p126 = por %p124, %p125
      %p127 = scmp.ne.s32.totalorder %s116, %s117
      %p128 = scmp.eq.s32.totalorder %s21, 0
      %p129 = por %p127, %p128
      %p130 = scmp.ne.s32.totalorder %s116, %s117
      %p131 = scmp.eq.s32.totalorder %s22, 1
      %p132 = por %p130, %p131
      %p134 = scmp.ne.s32.totalorder %s117, %s133
      %p135 = scmp.eq.s32.totalorder %s22, 0
      %p136 = por %p134, %p135
      %p137 = scmp.le.s32.totalorder 1, %s16
      %p138 = scmp.lt.s32.totalorder %s16, 3
      %p139 = pnand %p137, %p138
      %p140 = pneg %p139
      // Predicated region
      $region9: #{tpu_custom_call.1} parent=5 // pred_check
        _
      $region10: #{tpu_custom_call.1} parent=5 // pred_check_branch
        %142 = sbr.rel (%p139) target = $region12
      $region11: #{tpu_custom_call.1} parent=5 // pred_region
        %s143 = ssub.s32 %s16, 1
        // Predicated region
        $region13: #{tpu_custom_call.1} parent=11 // pred_check
          %p144 = pneg %p75
        $region14: #{tpu_custom_call.1} parent=11 // pred_check_branch
          %146 = sbr.rel (%p144) target = $region16
        $region15: #{tpu_custom_call.1} parent=11 // pred_region
          %148 = vsyncadd [#allocation7], 0
          %s150 = sshll.u32 %s1, 4
          %s151 = int_to_ptr.hbm [resolvable:$true] %s150
          %s152 = sshll.u32 [#allocation6], 4
          %s153 = int_to_ptr.vmem [resolvable:$true] %s152
          %155 = dma.hbm_to_vmem [thread:$0]  %s151, 112, %s153, [#allocation7]
        $region16: #{tpu_custom_call.1} parent=11 // pred_fallthru
          _
      $region12: #{tpu_custom_call.1} parent=5 // pred_fallthru
        _
      %p156 = scmp.lt.s32.totalorder %s16, 2
      // Predicated region
      $region17: #{tpu_custom_call.1} parent=5 // pred_check
        %p157 = pneg %p156
      $region18: #{tpu_custom_call.1} parent=5 // pred_check_branch
        %159 = sbr.rel (%p157) target = $region20
      $region19: #{tpu_custom_call.1} parent=5 // pred_region
        // Predicated region
        $region21: #{tpu_custom_call.1} parent=19 // pred_check
          %p160 = pneg %p48
        $region22: #{tpu_custom_call.1} parent=19 // pred_check_branch
          %162 = sbr.rel (%p160) target = $region24
        $region23: #{tpu_custom_call.1} parent=19 // pred_region
          %s163 = sand.u32 %s16, 1
          %s164 = scalar_lea.sflag [#allocation4], %s163
          %s165 = sand.u32 %s38, 1
          %s166 = smul.addr %s165, 7
          %s167 = scalar_lea.vmem [#allocation3], %s166
          %s168 = smul.u32 7, %s23
          %170 = vsyncadd %s164, 0
          %s171 = scalar_lea.hbm %s0, %s168
          %s173 = sshll.u32 %s171, 4
          %s174 = int_to_ptr.hbm [resolvable:$true] %s173
          %s175 = sshll.u32 %s167, 4
          %s176 = int_to_ptr.vmem [resolvable:$true] %s175
          %178 = dma.hbm_to_vmem [thread:$0]  %s174, 112, %s176, %s164
        $region24: #{tpu_custom_call.1} parent=19 // pred_fallthru
          _
        // Predicated region
        $region25: #{tpu_custom_call.1} parent=19 // pred_check
          %p179 = pneg %p97
        $region26: #{tpu_custom_call.1} parent=19 // pred_check_branch
          %181 = sbr.rel (%p179) target = $region28
        $region27: #{tpu_custom_call.1} parent=19 // pred_region
          %s182 = sand.u32 %s16, 1
          %s183 = scalar_lea.sflag [#allocation4], %s182
          %s184 = sand.u32 %s87, 1
          %s185 = smul.addr %s184, 896
          %s186 = scalar_lea.vmem [#allocation8], %s185
          %s187 = smul.u32 16, %s24
          %s188 = smul.u32 7, %s23
          %190 = vsyncadd %s183, 0
          %s191 = smul.addr %s187, 14
          %s192 = sadd.s32 %s188, %s191
          %s193 = smul.addr %s192, 8
          %s194 = scalar_lea.hbm %s2, %s193
          %s195 = sshll.u32 %s194, 4
          %s196 = int_to_ptr.hbm [resolvable:$true] %s195
          %s197 = sshll.u32 %s186, 4
          %s198 = int_to_ptr.vmem [resolvable:$true] %s197
          %203 = dma.hbm_to_vmem [thread:$0]  %s196, 14336, %s198, %s183, 1792, 896, 56
        $region28: #{tpu_custom_call.1} parent=19 // pred_fallthru
          _
      $region20: #{tpu_custom_call.1} parent=5 // pred_fallthru
        _
      %p204 = scmp.le.s32.totalorder 1, %s16
      %p205 = scmp.lt.s32.totalorder %s16, 3
      %p206 = pnand %p204, %p205
      %p207 = pneg %p206
      // Predicated region
      $region29: #{tpu_custom_call.1} parent=5 // pred_check
        _
      $region30: #{tpu_custom_call.1} parent=5 // pred_check_branch
        %209 = sbr.rel (%p206) target = $region32
      $region31: #{tpu_custom_call.1} parent=5 // pred_region
        %s210 = ssub.s32 %s16, 1
        %s211 = sand.u32 %s21, 1
        %s212 = scalar_lea.sflag [#allocation4], %s211
        %s213 = sand.u32 %s41, 1
        %s214 = smul.addr %s213, 7
        %s215 = scalar_lea.vmem [#allocation3], %s214
        // Predicated region
        $region33: #{tpu_custom_call.1} parent=31 // pred_check
          %p216 = pneg %p54
        $region34: #{tpu_custom_call.1} parent=31 // pred_check_branch
          %218 = sbr.rel (%p216) target = $region36
        $region35: #{tpu_custom_call.1} parent=31 // pred_region
          %220 = dma.done %s212, 112
        $region36: #{tpu_custom_call.1} parent=31 // pred_fallthru
          _
        // Predicated region
        $region37: #{tpu_custom_call.1} parent=31 // pred_check
          %p221 = pneg %p75
        $region38: #{tpu_custom_call.1} parent=31 // pred_check_branch
          %223 = sbr.rel (%p221) target = $region40
        $region39: #{tpu_custom_call.1} parent=31 // pred_region
          %225 = dma.done [#allocation7], 112
        $region40: #{tpu_custom_call.1} parent=31 // pred_fallthru
          _
        %s226 = sand.u32 %s21, 1
        %s227 = scalar_lea.sflag [#allocation4], %s226
        %s228 = sand.u32 %s90, 1
        %s229 = smul.addr %s228, 896
        %s230 = scalar_lea.vmem [#allocation8], %s229
        // Predicated region
        $region41: #{tpu_custom_call.1} parent=31 // pred_check
          %p231 = pneg %p103
        $region42: #{tpu_custom_call.1} parent=31 // pred_check_branch
          %233 = sbr.rel (%p231) target = $region44
        $region43: #{tpu_custom_call.1} parent=31 // pred_region
          %235 = dma.done %s227, 14336
        $region44: #{tpu_custom_call.1} parent=31 // pred_fallthru
          _
        %s236 = sand.u32 %s21, 1
        %s237 = scalar_lea.sflag [#allocation4], %s236
        %s238 = sand.u32 %s41, 1
        %s239 = smul.addr %s238, 7
        %s240 = scalar_lea.vmem [#allocation3], %s239
        %p241 = pneg %p54
        %p242 = pneg %p51
        %p243 = pneg %p75
        %p244 = pneg %p72
        %s245 = sand.u32 %s21, 1
        %s246 = scalar_lea.sflag [#allocation4], %s245
        %s247 = sand.u32 %s90, 1
        %s248 = smul.addr %s247, 896
        %s249 = scalar_lea.vmem [#allocation8], %s248
        %p250 = pneg %p103
        %p251 = pneg %p100
        %p252 = pneg %p129
        %p253 = pneg %p126
        %s254 = sand.u32 %s116, 1
        %s255 = scalar_lea.sflag [#allocation5], %s254
        %s256 = sand.u32 %s116, 1
        %s257 = smul.addr %s256, 7
        %s258 = scalar_lea.vmem [#allocation9], %s257
        %s259 = smul.u32 7, %s25
        %s260 = smul.u32 16, %s26
        %s261 = smul.u32 7, %s25
        %s262 = smul.u32 7, %s25
        %p263 = scmp.eq.s32.totalorder %s26, 0
        // Predicated region
        $region45: #{tpu_custom_call.1} parent=31 // pred_check
          %p264 = pneg %p263
        $region46: #{tpu_custom_call.1} parent=31 // pred_check_branch
          %266 = sbr.rel (%p264) target = $region48
        $region47: #{tpu_custom_call.1} parent=31 // pred_region
          %v267 = vlaneseq
          %vm268 = vcmp.ge.s32.totalorder %v267, 0
          %vm269 = vcmp.lt.s32.totalorder %v267, 896
          %vm270 = vmand %vm268, %vm269
          %271 = vst.msk [vmem:[#allocation2] sm:$0x7f] %vm270, 0.0
        $region48: #{tpu_custom_call.1} parent=31 // pred_fallthru
          _
        %v272 = vld [vmem:[%s230] sm:$0xff]
        %v273 = vld [vmem:[%s230 + $0x8] sm:$0xff]
        %v274 = vld [vmem:[%s230 + $0x10] sm:$0xff]
        %v275 = vld [vmem:[%s230 + $0x18] sm:$0xff]
        %v276 = vld [vmem:[%s230 + $0x20] sm:$0xff]
        %v277 = vld [vmem:[%s230 + $0x28] sm:$0xff]
        %v278 = vld [vmem:[%s230 + $0x30] sm:$0xff]
        %v279 = vld [vmem:[%s230 + $0x38] sm:$0xff]
        %v280 = vld [vmem:[%s230 + $0x40] sm:$0xff]
        %v281 = vld [vmem:[%s230 + $0x48] sm:$0xff]
        %v282 = vld [vmem:[%s230 + $0x50] sm:$0xff]
        %v283 = vld [vmem:[%s230 + $0x58] sm:$0xff]
        %v284 = vld [vmem:[%s230 + $0x60] sm:$0xff]
        %v285 = vld [vmem:[%s230 + $0x68] sm:$0xff]
        %v286 = vld [vmem:[%s230 + $0x70] sm:$0xff]
        %v287 = vld [vmem:[%s230 + $0x78] sm:$0xff]
        %v288 = vld [vmem:[%s230 + $0x80] sm:$0xff]
        %v289 = vld [vmem:[%s230 + $0x88] sm:$0xff]
        %v290 = vld [vmem:[%s230 + $0x90] sm:$0xff]
        %v291 = vld [vmem:[%s230 + $0x98] sm:$0xff]
        %v292 = vld [vmem:[%s230 + $0xa0] sm:$0xff]
        %v293 = vld [vmem:[%s230 + $0xa8] sm:$0xff]
        %v294 = vld [vmem:[%s230 + $0xb0] sm:$0xff]
        %v295 = vld [vmem:[%s230 + $0xb8] sm:$0xff]
        %v296 = vld [vmem:[%s230 + $0xc0] sm:$0xff]
        %v297 = vld [vmem:[%s230 + $0xc8] sm:$0xff]
        %v298 = vld [vmem:[%s230 + $0xd0] sm:$0xff]
        %v299 = vld [vmem:[%s230 + $0xd8] sm:$0xff]
        %v300 = vld [vmem:[%s230 + $0xe0] sm:$0xff]
        %v301 = vld [vmem:[%s230 + $0xe8] sm:$0xff]
        %v302 = vld [vmem:[%s230 + $0xf0] sm:$0xff]
        %v303 = vld [vmem:[%s230 + $0xf8] sm:$0xff]
        %v304 = vld [vmem:[%s230 + $0x100] sm:$0xff]
        %v305 = vld [vmem:[%s230 + $0x108] sm:$0xff]
        %v306 = vld [vmem:[%s230 + $0x110] sm:$0xff]
        %v307 = vld [vmem:[%s230 + $0x118] sm:$0xff]
        %v308 = vld [vmem:[%s230 + $0x120] sm:$0xff]
        %v309 = vld [vmem:[%s230 + $0x128] sm:$0xff]
        %v310 = vld [vmem:[%s230 + $0x130] sm:$0xff]
        %v311 = vld [vmem:[%s230 + $0x138] sm:$0xff]
        %v312 = vld [vmem:[%s230 + $0x140] sm:$0xff]
        %v313 = vld [vmem:[%s230 + $0x148] sm:$0xff]
        %v314 = vld [vmem:[%s230 + $0x150] sm:$0xff]
        %v315 = vld [vmem:[%s230 + $0x158] sm:$0xff]
        %v316 = vld [vmem:[%s230 + $0x160] sm:$0xff]
        %v317 = vld [vmem:[%s230 + $0x168] sm:$0xff]
        %v318 = vld [vmem:[%s230 + $0x170] sm:$0xff]
        %v319 = vld [vmem:[%s230 + $0x178] sm:$0xff]
        %v320 = vld [vmem:[%s230 + $0x180] sm:$0xff]
        %v321 = vld [vmem:[%s230 + $0x188] sm:$0xff]
        %v322 = vld [vmem:[%s230 + $0x190] sm:$0xff]
        %v323 = vld [vmem:[%s230 + $0x198] sm:$0xff]
        %v324 = vld [vmem:[%s230 + $0x1a0] sm:$0xff]
        %v325 = vld [vmem:[%s230 + $0x1a8] sm:$0xff]
        %v326 = vld [vmem:[%s230 + $0x1b0] sm:$0xff]
        %v327 = vld [vmem:[%s230 + $0x1b8] sm:$0xff]
        %v328 = vld [vmem:[%s230 + $0x1c0] sm:$0xff]
        %v329 = vld [vmem:[%s230 + $0x1c8] sm:$0xff]
        %v330 = vld [vmem:[%s230 + $0x1d0] sm:$0xff]
        %v331 = vld [vmem:[%s230 + $0x1d8] sm:$0xff]
        %v332 = vld [vmem:[%s230 + $0x1e0] sm:$0xff]
        %v333 = vld [vmem:[%s230 + $0x1e8] sm:$0xff]
        %v334 = vld [vmem:[%s230 + $0x1f0] sm:$0xff]
        %v335 = vld [vmem:[%s230 + $0x1f8] sm:$0xff]
        %v336 = vld [vmem:[%s230 + $0x200] sm:$0xff]
        %v337 = vld [vmem:[%s230 + $0x208] sm:$0xff]
        %v338 = vld [vmem:[%s230 + $0x210] sm:$0xff]
        %v339 = vld [vmem:[%s230 + $0x218] sm:$0xff]
        %v340 = vld [vmem:[%s230 + $0x220] sm:$0xff]
        %v341 = vld [vmem:[%s230 + $0x228] sm:$0xff]
        %v342 = vld [vmem:[%s230 + $0x230] sm:$0xff]
        %v343 = vld [vmem:[%s230 + $0x238] sm:$0xff]
        %v344 = vld [vmem:[%s230 + $0x240] sm:$0xff]
        %v345 = vld [vmem:[%s230 + $0x248] sm:$0xff]
        %v346 = vld [vmem:[%s230 + $0x250] sm:$0xff]
        %v347 = vld [vmem:[%s230 + $0x258] sm:$0xff]
        %v348 = vld [vmem:[%s230 + $0x260] sm:$0xff]
        %v349 = vld [vmem:[%s230 + $0x268] sm:$0xff]
        %v350 = vld [vmem:[%s230 + $0x270] sm:$0xff]
        %v351 = vld [vmem:[%s230 + $0x278] sm:$0xff]
        %v352 = vld [vmem:[%s230 + $0x280] sm:$0xff]
        %v353 = vld [vmem:[%s230 + $0x288] sm:$0xff]
        %v354 = vld [vmem:[%s230 + $0x290] sm:$0xff]
        %v355 = vld [vmem:[%s230 + $0x298] sm:$0xff]
        %v356 = vld [vmem:[%s230 + $0x2a0] sm:$0xff]
        %v357 = vld [vmem:[%s230 + $0x2a8] sm:$0xff]
        %v358 = vld [vmem:[%s230 + $0x2b0] sm:$0xff]
        %v359 = vld [vmem:[%s230 + $0x2b8] sm:$0xff]
        %v360 = vld [vmem:[%s230 + $0x2c0] sm:$0xff]
        %v361 = vld [vmem:[%s230 + $0x2c8] sm:$0xff]
        %v362 = vld [vmem:[%s230 + $0x2d0] sm:$0xff]
        %v363 = vld [vmem:[%s230 + $0x2d8] sm:$0xff]
        %v364 = vld [vmem:[%s230 + $0x2e0] sm:$0xff]
        %v365 = vld [vmem:[%s230 + $0x2e8] sm:$0xff]
        %v366 = vld [vmem:[%s230 + $0x2f0] sm:$0xff]
        %v367 = vld [vmem:[%s230 + $0x2f8] sm:$0xff]
        %v368 = vld [vmem:[%s230 + $0x300] sm:$0xff]
        %v369 = vld [vmem:[%s230 + $0x308] sm:$0xff]
        %v370 = vld [vmem:[%s230 + $0x310] sm:$0xff]
        %v371 = vld [vmem:[%s230 + $0x318] sm:$0xff]
        %v372 = vld [vmem:[%s230 + $0x320] sm:$0xff]
        %v373 = vld [vmem:[%s230 + $0x328] sm:$0xff]
        %v374 = vld [vmem:[%s230 + $0x330] sm:$0xff]
        %v375 = vld [vmem:[%s230 + $0x338] sm:$0xff]
        %v376 = vld [vmem:[%s230 + $0x340] sm:$0xff]
        %v377 = vld [vmem:[%s230 + $0x348] sm:$0xff]
        %v378 = vld [vmem:[%s230 + $0x350] sm:$0xff]
        %v379 = vld [vmem:[%s230 + $0x358] sm:$0xff]
        %v380 = vld [vmem:[%s230 + $0x360] sm:$0xff]
        %v381 = vld [vmem:[%s230 + $0x368] sm:$0xff]
        %v382 = vld [vmem:[%s230 + $0x370] sm:$0xff]
        %v383 = vld [vmem:[%s230 + $0x378] sm:$0xff]
        %v384 = vld [vmem:[#allocation6] sm:$0xff]
        %385 = vrot.lane.b32.xlu0 %v272, 1
        %v386 = vpop.permute.xlu0 %385
        %387 = vrot.lane.b32.xlu0 %v279, 1
        %v388 = vpop.permute.xlu0 %387
        %389 = vrot.lane.b32.xlu0 %v286, 1
        %v390 = vpop.permute.xlu0 %389
        %391 = vrot.lane.b32.xlu0 %v293, 1
        %v392 = vpop.permute.xlu0 %391
        %393 = vrot.lane.b32.xlu0 %v300, 1
        %v394 = vpop.permute.xlu0 %393
        %395 = vrot.lane.b32.xlu0 %v307, 1
        %v396 = vpop.permute.xlu0 %395
        %397 = vrot.lane.b32.xlu0 %v314, 1
        %v398 = vpop.permute.xlu0 %397
        %399 = vrot.lane.b32.xlu0 %v321, 1
        %v400 = vpop.permute.xlu0 %399
        %401 = vrot.lane.b32.xlu0 %v328, 1
        %v402 = vpop.permute.xlu0 %401
        %403 = vrot.lane.b32.xlu0 %v335, 1
        %v404 = vpop.permute.xlu0 %403
        %405 = vrot.lane.b32.xlu0 %v342, 1
        %v406 = vpop.permute.xlu0 %405
        %407 = vrot.lane.b32.xlu0 %v349, 1
        %v408 = vpop.permute.xlu0 %407
        %409 = vrot.lane.b32.xlu0 %v356, 1
        %v410 = vpop.permute.xlu0 %409
        %411 = vrot.lane.b32.xlu0 %v363, 1
        %v412 = vpop.permute.xlu0 %411
        %413 = vrot.lane.b32.xlu0 %v370, 1
        %v414 = vpop.permute.xlu0 %413
        %415 = vrot.lane.b32.xlu0 %v377, 1
        %v416 = vpop.permute.xlu0 %415
        %417 = vrot.lane.b32.xlu0 %v273, 1
        %v418 = vpop.permute.xlu0 %417
        %419 = vrot.lane.b32.xlu0 %v280, 1
        %v420 = vpop.permute.xlu0 %419
        %421 = vrot.lane.b32.xlu0 %v287, 1
        %v422 = vpop.permute.xlu0 %421
        %423 = vrot.lane.b32.xlu0 %v294, 1
        %v424 = vpop.permute.xlu0 %423
        %425 = vrot.lane.b32.xlu0 %v301, 1
        %v426 = vpop.permute.xlu0 %425
        %427 = vrot.lane.b32.xlu0 %v308, 1
        %v428 = vpop.permute.xlu0 %427
        %429 = vrot.lane.b32.xlu0 %v315, 1
        %v430 = vpop.permute.xlu0 %429
        %431 = vrot.lane.b32.xlu0 %v322, 1
        %v432 = vpop.permute.xlu0 %431
        %433 = vrot.lane.b32.xlu0 %v329, 1
        %v434 = vpop.permute.xlu0 %433
        %435 = vrot.lane.b32.xlu0 %v336, 1
        %v436 = vpop.permute.xlu0 %435
        %437 = vrot.lane.b32.xlu0 %v343, 1
        %v438 = vpop.permute.xlu0 %437
        %439 = vrot.lane.b32.xlu0 %v350, 1
        %v440 = vpop.permute.xlu0 %439
        %441 = vrot.lane.b32.xlu0 %v357, 1
        %v442 = vpop.permute.xlu0 %441
        %443 = vrot.lane.b32.xlu0 %v364, 1
        %v444 = vpop.permute.xlu0 %443
        %445 = vrot.lane.b32.xlu0 %v371, 1
        %v446 = vpop.permute.xlu0 %445
        %447 = vrot.lane.b32.xlu0 %v378, 1
        %v448 = vpop.permute.xlu0 %447
        %449 = vrot.lane.b32.xlu0 %v274, 1
        %v450 = vpop.permute.xlu0 %449
        %451 = vrot.lane.b32.xlu0 %v281, 1
        %v452 = vpop.permute.xlu0 %451
        %453 = vrot.lane.b32.xlu0 %v288, 1
        %v454 = vpop.permute.xlu0 %453
        %455 = vrot.lane.b32.xlu0 %v295, 1
        %v456 = vpop.permute.xlu0 %455
        %457 = vrot.lane.b32.xlu0 %v302, 1
        %v458 = vpop.permute.xlu0 %457
        %459 = vrot.lane.b32.xlu0 %v309, 1
        %v460 = vpop.permute.xlu0 %459
        %461 = vrot.lane.b32.xlu0 %v316, 1
        %v462 = vpop.permute.xlu0 %461
        %463 = vrot.lane.b32.xlu0 %v323, 1
        %v464 = vpop.permute.xlu0 %463
        %465 = vrot.lane.b32.xlu0 %v330, 1
        %v466 = vpop.permute.xlu0 %465
        %467 = vrot.lane.b32.xlu0 %v337, 1
        %v468 = vpop.permute.xlu0 %467
        %469 = vrot.lane.b32.xlu0 %v344, 1
        %v470 = vpop.permute.xlu0 %469
        %471 = vrot.lane.b32.xlu0 %v351, 1
        %v472 = vpop.permute.xlu0 %471
        %473 = vrot.lane.b32.xlu0 %v358, 1
        %v474 = vpop.permute.xlu0 %473
        %475 = vrot.lane.b32.xlu0 %v365, 1
        %v476 = vpop.permute.xlu0 %475
        %477 = vrot.lane.b32.xlu0 %v372, 1
        %v478 = vpop.permute.xlu0 %477
        %479 = vrot.lane.b32.xlu0 %v379, 1
        %v480 = vpop.permute.xlu0 %479
        %481 = vrot.lane.b32.xlu0 %v275, 1
        %v482 = vpop.permute.xlu0 %481
        %483 = vrot.lane.b32.xlu0 %v282, 1
        %v484 = vpop.permute.xlu0 %483
        %485 = vrot.lane.b32.xlu0 %v289, 1
        %v486 = vpop.permute.xlu0 %485
        %487 = vrot.lane.b32.xlu0 %v296, 1
        %v488 = vpop.permute.xlu0 %487
        %489 = vrot.lane.b32.xlu0 %v303, 1
        %v490 = vpop.permute.xlu0 %489
        %491 = vrot.lane.b32.xlu0 %v310, 1
        %v492 = vpop.permute.xlu0 %491
        %493 = vrot.lane.b32.xlu0 %v317, 1
        %v494 = vpop.permute.xlu0 %493
        %495 = vrot.lane.b32.xlu0 %v324, 1
        %v496 = vpop.permute.xlu0 %495
        %497 = vrot.lane.b32.xlu0 %v331, 1
        %v498 = vpop.permute.xlu0 %497
        %499 = vrot.lane.b32.xlu0 %v338, 1
        %v500 = vpop.permute.xlu0 %499
        %501 = vrot.lane.b32.xlu0 %v345, 1
        %v502 = vpop.permute.xlu0 %501
        %503 = vrot.lane.b32.xlu0 %v352, 1
        %v504 = vpop.permute.xlu0 %503
        %505 = vrot.lane.b32.xlu0 %v359, 1
        %v506 = vpop.permute.xlu0 %505
        %507 = vrot.lane.b32.xlu0 %v366, 1
        %v508 = vpop.permute.xlu0 %507
        %509 = vrot.lane.b32.xlu0 %v373, 1
        %v510 = vpop.permute.xlu0 %509
        %511 = vrot.lane.b32.xlu0 %v380, 1
        %v512 = vpop.permute.xlu0 %511
        %513 = vrot.lane.b32.xlu0 %v276, 1
        %v514 = vpop.permute.xlu0 %513
        %515 = vrot.lane.b32.xlu0 %v283, 1
        %v516 = vpop.permute.xlu0 %515
        %517 = vrot.lane.b32.xlu0 %v290, 1
        %v518 = vpop.permute.xlu0 %517
        %519 = vrot.lane.b32.xlu0 %v297, 1
        %v520 = vpop.permute.xlu0 %519
        %521 = vrot.lane.b32.xlu0 %v304, 1
        %v522 = vpop.permute.xlu0 %521
        %523 = vrot.lane.b32.xlu0 %v311, 1
        %v524 = vpop.permute.xlu0 %523
        %525 = vrot.lane.b32.xlu0 %v318, 1
        %v526 = vpop.permute.xlu0 %525
        %527 = vrot.lane.b32.xlu0 %v325, 1
        %v528 = vpop.permute.xlu0 %527
        %529 = vrot.lane.b32.xlu0 %v332, 1
        %v530 = vpop.permute.xlu0 %529
        %531 = vrot.lane.b32.xlu0 %v339, 1
        %v532 = vpop.permute.xlu0 %531
        %533 = vrot.lane.b32.xlu0 %v346, 1
        %v534 = vpop.permute.xlu0 %533
        %535 = vrot.lane.b32.xlu0 %v353, 1
        %v536 = vpop.permute.xlu0 %535
        %537 = vrot.lane.b32.xlu0 %v360, 1
        %v538 = vpop.permute.xlu0 %537
        %539 = vrot.lane.b32.xlu0 %v367, 1
        %v540 = vpop.permute.xlu0 %539
        %541 = vrot.lane.b32.xlu0 %v374, 1
        %v542 = vpop.permute.xlu0 %541
        %543 = vrot.lane.b32.xlu0 %v381, 1
        %v544 = vpop.permute.xlu0 %543
        %545 = vrot.lane.b32.xlu0 %v277, 1
        %v546 = vpop.permute.xlu0 %545
        %547 = vrot.lane.b32.xlu0 %v284, 1
        %v548 = vpop.permute.xlu0 %547
        %549 = vrot.lane.b32.xlu0 %v291, 1
        %v550 = vpop.permute.xlu0 %549
        %551 = vrot.lane.b32.xlu0 %v298, 1
        %v552 = vpop.permute.xlu0 %551
        %553 = vrot.lane.b32.xlu0 %v305, 1
        %v554 = vpop.permute.xlu0 %553
        %555 = vrot.lane.b32.xlu0 %v312, 1
        %v556 = vpop.permute.xlu0 %555
        %557 = vrot.lane.b32.xlu0 %v319, 1
        %v558 = vpop.permute.xlu0 %557
        %559 = vrot.lane.b32.xlu0 %v326, 1
        %v560 = vpop.permute.xlu0 %559
        %561 = vrot.lane.b32.xlu0 %v333, 1
        %v562 = vpop.permute.xlu0 %561
        %563 = vrot.lane.b32.xlu0 %v340, 1
        %v564 = vpop.permute.xlu0 %563
        %565 = vrot.lane.b32.xlu0 %v347, 1
        %v566 = vpop.permute.xlu0 %565
        %567 = vrot.lane.b32.xlu0 %v354, 1
        %v568 = vpop.permute.xlu0 %567
        %569 = vrot.lane.b32.xlu0 %v361, 1
        %v570 = vpop.permute.xlu0 %569
        %571 = vrot.lane.b32.xlu0 %v368, 1
        %v572 = vpop.permute.xlu0 %571
        %573 = vrot.lane.b32.xlu0 %v375, 1
        %v574 = vpop.permute.xlu0 %573
        %575 = vrot.lane.b32.xlu0 %v382, 1
        %v576 = vpop.permute.xlu0 %575
        %577 = vrot.lane.b32.xlu0 %v278, 1
        %v578 = vpop.permute.xlu0 %577
        %579 = vrot.lane.b32.xlu0 %v285, 1
        %v580 = vpop.permute.xlu0 %579
        %581 = vrot.lane.b32.xlu0 %v292, 1
        %v582 = vpop.permute.xlu0 %581
        %583 = vrot.lane.b32.xlu0 %v299, 1
        %v584 = vpop.permute.xlu0 %583
        %585 = vrot.lane.b32.xlu0 %v306, 1
        %v586 = vpop.permute.xlu0 %585
        %587 = vrot.lane.b32.xlu0 %v313, 1
        %v588 = vpop.permute.xlu0 %587
        %589 = vrot.lane.b32.xlu0 %v320, 1
        %v590 = vpop.permute.xlu0 %589
        %591 = vrot.lane.b32.xlu0 %v327, 1
        %v592 = vpop.permute.xlu0 %591
        %593 = vrot.lane.b32.xlu0 %v334, 1
        %v594 = vpop.permute.xlu0 %593
        %595 = vrot.lane.b32.xlu0 %v341, 1
        %v596 = vpop.permute.xlu0 %595
        %597 = vrot.lane.b32.xlu0 %v348, 1
        %v598 = vpop.permute.xlu0 %597
        %599 = vrot.lane.b32.xlu0 %v355, 1
        %v600 = vpop.permute.xlu0 %599
        %601 = vrot.lane.b32.xlu0 %v362, 1
        %v602 = vpop.permute.xlu0 %601
        %603 = vrot.lane.b32.xlu0 %v369, 1
        %v604 = vpop.permute.xlu0 %603
        %605 = vrot.lane.b32.xlu0 %v376, 1
        %v606 = vpop.permute.xlu0 %605
        %607 = vrot.lane.b32.xlu0 %v383, 1
        %v608 = vpop.permute.xlu0 %607
        %v609 = vlaneseq
        %v610 = vand.u32 %v609, 127
        %vm611 = vcmp.lt.s32.totalorder %v610, 1
        %v612 = vsel %vm611, %v546, %v578
        %v613 = vsel %vm611, %v548, %v580
        %v614 = vsel %vm611, %v550, %v582
        %v615 = vsel %vm611, %v552, %v584
        %v616 = vsel %vm611, %v554, %v586
        %v617 = vsel %vm611, %v556, %v588
        %v618 = vsel %vm611, %v558, %v590
        %v619 = vsel %vm611, %v560, %v592
        %v620 = vsel %vm611, %v562, %v594
        %v621 = vsel %vm611, %v564, %v596
        %v622 = vsel %vm611, %v566, %v598
        %v623 = vsel %vm611, %v568, %v600
        %v624 = vsel %vm611, %v570, %v602
        %v625 = vsel %vm611, %v572, %v604
        %v626 = vsel %vm611, %v574, %v606
        %v627 = vsel %vm611, %v576, %v608
        %v628 = vsel %vm611, %v514, %v546
        %v629 = vsel %vm611, %v516, %v548
        %v630 = vsel %vm611, %v518, %v550
        %v631 = vsel %vm611, %v520, %v552
        %v632 = vsel %vm611, %v522, %v554
        %v633 = vsel %vm611, %v524, %v556
        %v634 = vsel %vm611, %v526, %v558
        %v635 = vsel %vm611, %v528, %v560
        %v636 = vsel %vm611, %v530, %v562
        %v637 = vsel %vm611, %v532, %v564
        %v638 = vsel %vm611, %v534, %v566
        %v639 = vsel %vm611, %v536, %v568
        %v640 = vsel %vm611, %v538, %v570
        %v641 = vsel %vm611, %v540, %v572
        %v642 = vsel %vm611, %v542, %v574
        %v643 = vsel %vm611, %v544, %v576
        %v644 = vsel %vm611, %v482, %v514
        %v645 = vsel %vm611, %v484, %v516
        %v646 = vsel %vm611, %v486, %v518
        %v647 = vsel %vm611, %v488, %v520
        %v648 = vsel %vm611, %v490, %v522
        %v649 = vsel %vm611, %v492, %v524
        %v650 = vsel %vm611, %v494, %v526
        %v651 = vsel %vm611, %v496, %v528
        %v652 = vsel %vm611, %v498, %v530
        %v653 = vsel %vm611, %v500, %v532
        %v654 = vsel %vm611, %v502, %v534
        %v655 = vsel %vm611, %v504, %v536
        %v656 = vsel %vm611, %v506, %v538
        %v657 = vsel %vm611, %v508, %v540
        %v658 = vsel %vm611, %v510, %v542
        %v659 = vsel %vm611, %v512, %v544
        %v660 = vsel %vm611, %v450, %v482
        %v661 = vsel %vm611, %v452, %v484
        %v662 = vsel %vm611, %v454, %v486
        %v663 = vsel %vm611, %v456, %v488
        %v664 = vsel %vm611, %v458, %v490
        %v665 = vsel %vm611, %v460, %v492
        %v666 = vsel %vm611, %v462, %v494
        %v667 = vsel %vm611, %v464, %v496
        %v668 = vsel %vm611, %v466, %v498
        %v669 = vsel %vm611, %v468, %v500
        %v670 = vsel %vm611, %v470, %v502
        %v671 = vsel %vm611, %v472, %v504
        %v672 = vsel %vm611, %v474, %v506
        %v673 = vsel %vm611, %v476, %v508
        %v674 = vsel %vm611, %v478, %v510
        %v675 = vsel %vm611, %v480, %v512
        %v676 = vsel %vm611, %v418, %v450
        %v677 = vsel %vm611, %v420, %v452
        %v678 = vsel %vm611, %v422, %v454
        %v679 = vsel %vm611, %v424, %v456
        %v680 = vsel %vm611, %v426, %v458
        %v681 = vsel %vm611, %v428, %v460
        %v682 = vsel %vm611, %v430, %v462
        %v683 = vsel %vm611, %v432, %v464
        %v684 = vsel %vm611, %v434, %v466
        %v685 = vsel %vm611, %v436, %v468
        %v686 = vsel %vm611, %v438, %v470
        %v687 = vsel %vm611, %v440, %v472
        %v688 = vsel %vm611, %v442, %v474
        %v689 = vsel %vm611, %v444, %v476
        %v690 = vsel %vm611, %v446, %v478
        %v691 = vsel %vm611, %v448, %v480
        %v692 = vsel %vm611, %v386, %v418
        %v693 = vsel %vm611, %v388, %v420
        %v694 = vsel %vm611, %v390, %v422
        %v695 = vsel %vm611, %v392, %v424
        %v696 = vsel %vm611, %v394, %v426
        %v697 = vsel %vm611, %v396, %v428
        %v698 = vsel %vm611, %v398, %v430
        %v699 = vsel %vm611, %v400, %v432
        %v700 = vsel %vm611, %v402, %v434
        %v701 = vsel %vm611, %v404, %v436
        %v702 = vsel %vm611, %v406, %v438
        %v703 = vsel %vm611, %v408, %v440
        %v704 = vsel %vm611, %v410, %v442
        %v705 = vsel %vm611, %v412, %v444
        %v706 = vsel %vm611, %v414, %v446
        %v707 = vsel %vm611, %v416, %v448
        %v708 = vsel %vm611, %v578, %v386
        %v709 = vsel %vm611, %v580, %v388
        %v710 = vsel %vm611, %v582, %v390
        %v711 = vsel %vm611, %v584, %v392
        %v712 = vsel %vm611, %v586, %v394
        %v713 = vsel %vm611, %v588, %v396
        %v714 = vsel %vm611, %v590, %v398
        %v715 = vsel %vm611, %v592, %v400
        %v716 = vsel %vm611, %v594, %v402
        %v717 = vsel %vm611, %v596, %v404
        %v718 = vsel %vm611, %v598, %v406
        %v719 = vsel %vm611, %v600, %v408
        %v720 = vsel %vm611, %v602, %v410
        %v721 = vsel %vm611, %v604, %v412
        %v722 = vsel %vm611, %v606, %v414
        %v723 = vsel %vm611, %v608, %v416
        %vm724 = vcmp.ge.s32.totalorder %v384, 1
        %v725 = vsel %vm724, 1, 0
        %v726 = vperm.slane %v725, 0
        %v727 = vperm.slane %v725, 1
        %v728 = vperm.slane %v725, 2
        %v729 = vperm.slane %v725, 3
        %v730 = vperm.slane %v725, 4
        %v731 = vperm.slane %v725, 5
        %v732 = vperm.slane %v725, 6
        %vm733 = vcmp.eq.s32.totalorder %v726, 1
        %vm734 = vcmp.eq.s32.totalorder %v727, 1
        %vm735 = vcmp.eq.s32.totalorder %v728, 1
        %vm736 = vcmp.eq.s32.totalorder %v729, 1
        %vm737 = vcmp.eq.s32.totalorder %v730, 1
        %vm738 = vcmp.eq.s32.totalorder %v731, 1
        %vm739 = vcmp.eq.s32.totalorder %v732, 1
        %v740 = vsel %vm733, %v708, %v272
        %v741 = vsel %vm734, %v692, %v273
        %v742 = vsel %vm735, %v676, %v274
        %v743 = vsel %vm736, %v660, %v275
        %v744 = vsel %vm737, %v644, %v276
        %v745 = vsel %vm738, %v628, %v277
        %v746 = vsel %vm739, %v612, %v278
        %v747 = vsel %vm733, %v709, %v279
        %v748 = vsel %vm734, %v693, %v280
        %v749 = vsel %vm735, %v677, %v281
        %v750 = vsel %vm736, %v661, %v282
        %v751 = vsel %vm737, %v645, %v283
        %v752 = vsel %vm738, %v629, %v284
        %v753 = vsel %vm739, %v613, %v285
        %v754 = vsel %vm733, %v710, %v286
        %v755 = vsel %vm734, %v694, %v287
        %v756 = vsel %vm735, %v678, %v288
        %v757 = vsel %vm736, %v662, %v289
        %v758 = vsel %vm737, %v646, %v290
        %v759 = vsel %vm738, %v630, %v291
        %v760 = vsel %vm739, %v614, %v292
        %v761 = vsel %vm733, %v711, %v293
        %v762 = vsel %vm734, %v695, %v294
        %v763 = vsel %vm735, %v679, %v295
        %v764 = vsel %vm736, %v663, %v296
        %v765 = vsel %vm737, %v647, %v297
        %v766 = vsel %vm738, %v631, %v298
        %v767 = vsel %vm739, %v615, %v299
        %v768 = vsel %vm733, %v712, %v300
        %v769 = vsel %vm734, %v696, %v301
        %v770 = vsel %vm735, %v680, %v302
        %v771 = vsel %vm736, %v664, %v303
        %v772 = vsel %vm737, %v648, %v304
        %v773 = vsel %vm738, %v632, %v305
        %v774 = vsel %vm739, %v616, %v306
        %v775 = vsel %vm733, %v713, %v307
        %v776 = vsel %vm734, %v697, %v308
        %v777 = vsel %vm735, %v681, %v309
        %v778 = vsel %vm736, %v665, %v310
        %v779 = vsel %vm737, %v649, %v311
        %v780 = vsel %vm738, %v633, %v312
        %v781 = vsel %vm739, %v617, %v313
        %v782 = vsel %vm733, %v714, %v314
        %v783 = vsel %vm734, %v698, %v315
        %v784 = vsel %vm735, %v682, %v316
        %v785 = vsel %vm736, %v666, %v317
        %v786 = vsel %vm737, %v650, %v318
        %v787 = vsel %vm738, %v634, %v319
        %v788 = vsel %vm739, %v618, %v320
        %v789 = vsel %vm733, %v715, %v321
        %v790 = vsel %vm734, %v699, %v322
        %v791 = vsel %vm735, %v683, %v323
        %v792 = vsel %vm736, %v667, %v324
        %v793 = vsel %vm737, %v651, %v325
        %v794 = vsel %vm738, %v635, %v326
        %v795 = vsel %vm739, %v619, %v327
        %v796 = vsel %vm733, %v716, %v328
        %v797 = vsel %vm734, %v700, %v329
        %v798 = vsel %vm735, %v684, %v330
        %v799 = vsel %vm736, %v668, %v331
        %v800 = vsel %vm737, %v652, %v332
        %v801 = vsel %vm738, %v636, %v333
        %v802 = vsel %vm739, %v620, %v334
        %v803 = vsel %vm733, %v717, %v335
        %v804 = vsel %vm734, %v701, %v336
        %v805 = vsel %vm735, %v685, %v337
        %v806 = vsel %vm736, %v669, %v338
        %v807 = vsel %vm737, %v653, %v339
        %v808 = vsel %vm738, %v637, %v340
        %v809 = vsel %vm739, %v621, %v341
        %v810 = vsel %vm733, %v718, %v342
        %v811 = vsel %vm734, %v702, %v343
        %v812 = vsel %vm735, %v686, %v344
        %v813 = vsel %vm736, %v670, %v345
        %v814 = vsel %vm737, %v654, %v346
        %v815 = vsel %vm738, %v638, %v347
        %v816 = vsel %vm739, %v622, %v348
        %v817 = vsel %vm733, %v719, %v349
        %v818 = vsel %vm734, %v703, %v350
        %v819 = vsel %vm735, %v687, %v351
        %v820 = vsel %vm736, %v671, %v352
        %v821 = vsel %vm737, %v655, %v353
        %v822 = vsel %vm738, %v639, %v354
        %v823 = vsel %vm739, %v623, %v355
        %v824 = vsel %vm733, %v720, %v356
        %v825 = vsel %vm734, %v704, %v357
        %v826 = vsel %vm735, %v688, %v358
        %v827 = vsel %vm736, %v672, %v359
        %v828 = vsel %vm737, %v656, %v360
        %v829 = vsel %vm738, %v640, %v361
        %v830 = vsel %vm739, %v624, %v362
        %v831 = vsel %vm733, %v721, %v363
        %v832 = vsel %vm734, %v705, %v364
        %v833 = vsel %vm735, %v689, %v365
        %v834 = vsel %vm736, %v673, %v366
        %v835 = vsel %vm737, %v657, %v367
        %v836 = vsel %vm738, %v641, %v368
        %v837 = vsel %vm739, %v625, %v369
        %v838 = vsel %vm733, %v722, %v370
        %v839 = vsel %vm734, %v706, %v371
        %v840 = vsel %vm735, %v690, %v372
        %v841 = vsel %vm736, %v674, %v373
        %v842 = vsel %vm737, %v658, %v374
        %v843 = vsel %vm738, %v642, %v375
        %v844 = vsel %vm739, %v626, %v376
        %v845 = vsel %vm733, %v723, %v377
        %v846 = vsel %vm734, %v707, %v378
        %v847 = vsel %vm735, %v691, %v379
        %v848 = vsel %vm736, %v675, %v380
        %v849 = vsel %vm737, %v659, %v381
        %v850 = vsel %vm738, %v643, %v382
        %v851 = vsel %vm739, %v627, %v383
        %852 = vrot.lane.b32.xlu0 %v740, 2
        %v853 = vpop.permute.xlu0 %852
        %854 = vrot.lane.b32.xlu0 %v747, 2
        %v855 = vpop.permute.xlu0 %854
        %856 = vrot.lane.b32.xlu0 %v754, 2
        %v857 = vpop.permute.xlu0 %856
        %858 = vrot.lane.b32.xlu0 %v761, 2
        %v859 = vpop.permute.xlu0 %858
        %860 = vrot.lane.b32.xlu0 %v768, 2
        %v861 = vpop.permute.xlu0 %860
        %862 = vrot.lane.b32.xlu0 %v775, 2
        %v863 = vpop.permute.xlu0 %862
        %864 = vrot.lane.b32.xlu0 %v782, 2
        %v865 = vpop.permute.xlu0 %864
        %866 = vrot.lane.b32.xlu0 %v789, 2
        %v867 = vpop.permute.xlu0 %866
        %868 = vrot.lane.b32.xlu0 %v796, 2
        %v869 = vpop.permute.xlu0 %868
        %870 = vrot.lane.b32.xlu0 %v803, 2
        %v871 = vpop.permute.xlu0 %870
        %872 = vrot.lane.b32.xlu0 %v810, 2
        %v873 = vpop.permute.xlu0 %872
        %874 = vrot.lane.b32.xlu0 %v817, 2
        %v875 = vpop.permute.xlu0 %874
        %876 = vrot.lane.b32.xlu0 %v824, 2
        %v877 = vpop.permute.xlu0 %876
        %878 = vrot.lane.b32.xlu0 %v831, 2
        %v879 = vpop.permute.xlu0 %878
        %880 = vrot.lane.b32.xlu0 %v838, 2
        %v881 = vpop.permute.xlu0 %880
        %882 = vrot.lane.b32.xlu0 %v845, 2
        %v883 = vpop.permute.xlu0 %882
        %884 = vrot.lane.b32.xlu0 %v741, 2
        %v885 = vpop.permute.xlu0 %884
        %886 = vrot.lane.b32.xlu0 %v748, 2
        %v887 = vpop.permute.xlu0 %886
        %888 = vrot.lane.b32.xlu0 %v755, 2
        %v889 = vpop.permute.xlu0 %888
        %890 = vrot.lane.b32.xlu0 %v762, 2
        %v891 = vpop.permute.xlu0 %890
        %892 = vrot.lane.b32.xlu0 %v769, 2
        %v893 = vpop.permute.xlu0 %892
        %894 = vrot.lane.b32.xlu0 %v776, 2
        %v895 = vpop.permute.xlu0 %894
        %896 = vrot.lane.b32.xlu0 %v783, 2
        %v897 = vpop.permute.xlu0 %896
        %898 = vrot.lane.b32.xlu0 %v790, 2
        %v899 = vpop.permute.xlu0 %898
        %900 = vrot.lane.b32.xlu0 %v797, 2
        %v901 = vpop.permute.xlu0 %900
        %902 = vrot.lane.b32.xlu0 %v804, 2
        %v903 = vpop.permute.xlu0 %902
        %904 = vrot.lane.b32.xlu0 %v811, 2
        %v905 = vpop.permute.xlu0 %904
        %906 = vrot.lane.b32.xlu0 %v818, 2
        %v907 = vpop.permute.xlu0 %906
        %908 = vrot.lane.b32.xlu0 %v825, 2
        %v909 = vpop.permute.xlu0 %908
        %910 = vrot.lane.b32.xlu0 %v832, 2
        %v911 = vpop.permute.xlu0 %910
        %912 = vrot.lane.b32.xlu0 %v839, 2
        %v913 = vpop.permute.xlu0 %912
        %914 = vrot.lane.b32.xlu0 %v846, 2
        %v915 = vpop.permute.xlu0 %914
        %916 = vrot.lane.b32.xlu0 %v742, 2
        %v917 = vpop.permute.xlu0 %916
        %918 = vrot.lane.b32.xlu0 %v749, 2
        %v919 = vpop.permute.xlu0 %918
        %920 = vrot.lane.b32.xlu0 %v756, 2
        %v921 = vpop.permute.xlu0 %920
        %922 = vrot.lane.b32.xlu0 %v763, 2
        %v923 = vpop.permute.xlu0 %922
        %924 = vrot.lane.b32.xlu0 %v770, 2
        %v925 = vpop.permute.xlu0 %924
        %926 = vrot.lane.b32.xlu0 %v777, 2
        %v927 = vpop.permute.xlu0 %926
        %928 = vrot.lane.b32.xlu0 %v784, 2
        %v929 = vpop.permute.xlu0 %928
        %930 = vrot.lane.b32.xlu0 %v791, 2
        %v931 = vpop.permute.xlu0 %930
        %932 = vrot.lane.b32.xlu0 %v798, 2
        %v933 = vpop.permute.xlu0 %932
        %934 = vrot.lane.b32.xlu0 %v805, 2
        %v935 = vpop.permute.xlu0 %934
        %936 = vrot.lane.b32.xlu0 %v812, 2
        %v937 = vpop.permute.xlu0 %936
        %938 = vrot.lane.b32.xlu0 %v819, 2
        %v939 = vpop.permute.xlu0 %938
        %940 = vrot.lane.b32.xlu0 %v826, 2
        %v941 = vpop.permute.xlu0 %940
        %942 = vrot.lane.b32.xlu0 %v833, 2
        %v943 = vpop.permute.xlu0 %942
        %944 = vrot.lane.b32.xlu0 %v840, 2
        %v945 = vpop.permute.xlu0 %944
        %946 = vrot.lane.b32.xlu0 %v847, 2
        %v947 = vpop.permute.xlu0 %946
        %948 = vrot.lane.b32.xlu0 %v743, 2
        %v949 = vpop.permute.xlu0 %948
        %950 = vrot.lane.b32.xlu0 %v750, 2
        %v951 = vpop.permute.xlu0 %950
        %952 = vrot.lane.b32.xlu0 %v757, 2
        %v953 = vpop.permute.xlu0 %952
        %954 = vrot.lane.b32.xlu0 %v764, 2
        %v955 = vpop.permute.xlu0 %954
        %956 = vrot.lane.b32.xlu0 %v771, 2
        %v957 = vpop.permute.xlu0 %956
        %958 = vrot.lane.b32.xlu0 %v778, 2
        %v959 = vpop.permute.xlu0 %958
        %960 = vrot.lane.b32.xlu0 %v785, 2
        %v961 = vpop.permute.xlu0 %960
        %962 = vrot.lane.b32.xlu0 %v792, 2
        %v963 = vpop.permute.xlu0 %962
        %964 = vrot.lane.b32.xlu0 %v799, 2
        %v965 = vpop.permute.xlu0 %964
        %966 = vrot.lane.b32.xlu0 %v806, 2
        %v967 = vpop.permute.xlu0 %966
        %968 = vrot.lane.b32.xlu0 %v813, 2
        %v969 = vpop.permute.xlu0 %968
        %970 = vrot.lane.b32.xlu0 %v820, 2
        %v971 = vpop.permute.xlu0 %970
        %972 = vrot.lane.b32.xlu0 %v827, 2
        %v973 = vpop.permute.xlu0 %972
        %974 = vrot.lane.b32.xlu0 %v834, 2
        %v975 = vpop.permute.xlu0 %974
        %976 = vrot.lane.b32.xlu0 %v841, 2
        %v977 = vpop.permute.xlu0 %976
        %978 = vrot.lane.b32.xlu0 %v848, 2
        %v979 = vpop.permute.xlu0 %978
        %980 = vrot.lane.b32.xlu0 %v744, 2
        %v981 = vpop.permute.xlu0 %980
        %982 = vrot.lane.b32.xlu0 %v751, 2
        %v983 = vpop.permute.xlu0 %982
        %984 = vrot.lane.b32.xlu0 %v758, 2
        %v985 = vpop.permute.xlu0 %984
        %986 = vrot.lane.b32.xlu0 %v765, 2
        %v987 = vpop.permute.xlu0 %986
        %988 = vrot.lane.b32.xlu0 %v772, 2
        %v989 = vpop.permute.xlu0 %988
        %990 = vrot.lane.b32.xlu0 %v779, 2
        %v991 = vpop.permute.xlu0 %990
        %992 = vrot.lane.b32.xlu0 %v786, 2
        %v993 = vpop.permute.xlu0 %992
        %994 = vrot.lane.b32.xlu0 %v793, 2
        %v995 = vpop.permute.xlu0 %994
        %996 = vrot.lane.b32.xlu0 %v800, 2
        %v997 = vpop.permute.xlu0 %996
        %998 = vrot.lane.b32.xlu0 %v807, 2
        %v999 = vpop.permute.xlu0 %998
        %1000 = vrot.lane.b32.xlu0 %v814, 2
        %v1001 = vpop.permute.xlu0 %1000
        %1002 = vrot.lane.b32.xlu0 %v821, 2
        %v1003 = vpop.permute.xlu0 %1002
        %1004 = vrot.lane.b32.xlu0 %v828, 2
        %v1005 = vpop.permute.xlu0 %1004
        %1006 = vrot.lane.b32.xlu0 %v835, 2
        %v1007 = vpop.permute.xlu0 %1006
        %1008 = vrot.lane.b32.xlu0 %v842, 2
        %v1009 = vpop.permute.xlu0 %1008
        %1010 = vrot.lane.b32.xlu0 %v849, 2
        %v1011 = vpop.permute.xlu0 %1010
        %1012 = vrot.lane.b32.xlu0 %v745, 2
        %v1013 = vpop.permute.xlu0 %1012
        %1014 = vrot.lane.b32.xlu0 %v752, 2
        %v1015 = vpop.permute.xlu0 %1014
        %1016 = vrot.lane.b32.xlu0 %v759, 2
        %v1017 = vpop.permute.xlu0 %1016
        %1018 = vrot.lane.b32.xlu0 %v766, 2
        %v1019 = vpop.permute.xlu0 %1018
        %1020 = vrot.lane.b32.xlu0 %v773, 2
        %v1021 = vpop.permute.xlu0 %1020
        %1022 = vrot.lane.b32.xlu0 %v780, 2
        %v1023 = vpop.permute.xlu0 %1022
        %1024 = vrot.lane.b32.xlu0 %v787, 2
        %v1025 = vpop.permute.xlu0 %1024
        %1026 = vrot.lane.b32.xlu0 %v794, 2
        %v1027 = vpop.permute.xlu0 %1026
        %1028 = vrot.lane.b32.xlu0 %v801, 2
        %v1029 = vpop.permute.xlu0 %1028
        %1030 = vrot.lane.b32.xlu0 %v808, 2
        %v1031 = vpop.permute.xlu0 %1030
        %1032 = vrot.lane.b32.xlu0 %v815, 2
        %v1033 = vpop.permute.xlu0 %1032
        %1034 = vrot.lane.b32.xlu0 %v822, 2
        %v1035 = vpop.permute.xlu0 %1034
        %1036 = vrot.lane.b32.xlu0 %v829, 2
        %v1037 = vpop.permute.xlu0 %1036
        %1038 = vrot.lane.b32.xlu0 %v836, 2
        %v1039 = vpop.permute.xlu0 %1038
        %1040 = vrot.lane.b32.xlu0 %v843, 2
        %v1041 = vpop.permute.xlu0 %1040
        %1042 = vrot.lane.b32.xlu0 %v850, 2
        %v1043 = vpop.permute.xlu0 %1042
        %1044 = vrot.lane.b32.xlu0 %v746, 2
        %v1045 = vpop.permute.xlu0 %1044
        %1046 = vrot.lane.b32.xlu0 %v753, 2
        %v1047 = vpop.permute.xlu0 %1046
        %1048 = vrot.lane.b32.xlu0 %v760, 2
        %v1049 = vpop.permute.xlu0 %1048
        %1050 = vrot.lane.b32.xlu0 %v767, 2
        %v1051 = vpop.permute.xlu0 %1050
        %1052 = vrot.lane.b32.xlu0 %v774, 2
        %v1053 = vpop.permute.xlu0 %1052
        %1054 = vrot.lane.b32.xlu0 %v781, 2
        %v1055 = vpop.permute.xlu0 %1054
        %1056 = vrot.lane.b32.xlu0 %v788, 2
        %v1057 = vpop.permute.xlu0 %1056
        %1058 = vrot.lane.b32.xlu0 %v795, 2
        %v1059 = vpop.permute.xlu0 %1058
        %1060 = vrot.lane.b32.xlu0 %v802, 2
        %v1061 = vpop.permute.xlu0 %1060
        %1062 = vrot.lane.b32.xlu0 %v809, 2
        %v1063 = vpop.permute.xlu0 %1062
        %1064 = vrot.lane.b32.xlu0 %v816, 2
        %v1065 = vpop.permute.xlu0 %1064
        %1066 = vrot.lane.b32.xlu0 %v823, 2
        %v1067 = vpop.permute.xlu0 %1066
        %1068 = vrot.lane.b32.xlu0 %v830, 2
        %v1069 = vpop.permute.xlu0 %1068
        %1070 = vrot.lane.b32.xlu0 %v837, 2
        %v1071 = vpop.permute.xlu0 %1070
        %1072 = vrot.lane.b32.xlu0 %v844, 2
        %v1073 = vpop.permute.xlu0 %1072
        %1074 = vrot.lane.b32.xlu0 %v851, 2
        %v1075 = vpop.permute.xlu0 %1074
        %vm1076 = vcmp.lt.s32.totalorder %v610, 2
        %v1077 = vsel %vm1076, %v1013, %v1045
        %v1078 = vsel %vm1076, %v1015, %v1047
        %v1079 = vsel %vm1076, %v1017, %v1049
        %v1080 = vsel %vm1076, %v1019, %v1051
        %v1081 = vsel %vm1076, %v1021, %v1053
        %v1082 = vsel %vm1076, %v1023, %v1055
        %v1083 = vsel %vm1076, %v1025, %v1057
        %v1084 = vsel %vm1076, %v1027, %v1059
        %v1085 = vsel %vm1076, %v1029, %v1061
        %v1086 = vsel %vm1076, %v1031, %v1063
        %v1087 = vsel %vm1076, %v1033, %v1065
        %v1088 = vsel %vm1076, %v1035, %v1067
        %v1089 = vsel %vm1076, %v1037, %v1069
        %v1090 = vsel %vm1076, %v1039, %v1071
        %v1091 = vsel %vm1076, %v1041, %v1073
        %v1092 = vsel %vm1076, %v1043, %v1075
        %v1093 = vsel %vm1076, %v981, %v1013
        %v1094 = vsel %vm1076, %v983, %v1015
        %v1095 = vsel %vm1076, %v985, %v1017
        %v1096 = vsel %vm1076, %v987, %v1019
        %v1097 = vsel %vm1076, %v989, %v1021
        %v1098 = vsel %vm1076, %v991, %v1023
        %v1099 = vsel %vm1076, %v993, %v1025
        %v1100 = vsel %vm1076, %v995, %v1027
        %v1101 = vsel %vm1076, %v997, %v1029
        %v1102 = vsel %vm1076, %v999, %v1031
        %v1103 = vsel %vm1076, %v1001, %v1033
        %v1104 = vsel %vm1076, %v1003, %v1035
        %v1105 = vsel %vm1076, %v1005, %v1037
        %v1106 = vsel %vm1076, %v1007, %v1039
        %v1107 = vsel %vm1076, %v1009, %v1041
        %v1108 = vsel %vm1076, %v1011, %v1043
        %v1109 = vsel %vm1076, %v949, %v981
        %v1110 = vsel %vm1076, %v951, %v983
        %v1111 = vsel %vm1076, %v953, %v985
        %v1112 = vsel %vm1076, %v955, %v987
        %v1113 = vsel %vm1076, %v957, %v989
        %v1114 = vsel %vm1076, %v959, %v991
        %v1115 = vsel %vm1076, %v961, %v993
        %v1116 = vsel %vm1076, %v963, %v995
        %v1117 = vsel %vm1076, %v965, %v997
        %v1118 = vsel %vm1076, %v967, %v999
        %v1119 = vsel %vm1076, %v969, %v1001
        %v1120 = vsel %vm1076, %v971, %v1003
        %v1121 = vsel %vm1076, %v973, %v1005
        %v1122 = vsel %vm1076, %v975, %v1007
        %v1123 = vsel %vm1076, %v977, %v1009
        %v1124 = vsel %vm1076, %v979, %v1011
        %v1125 = vsel %vm1076, %v917, %v949
        %v1126 = vsel %vm1076, %v919, %v951
        %v1127 = vsel %vm1076, %v921, %v953
        %v1128 = vsel %vm1076, %v923, %v955
        %v1129 = vsel %vm1076, %v925, %v957
        %v1130 = vsel %vm1076, %v927, %v959
        %v1131 = vsel %vm1076, %v929, %v961
        %v1132 = vsel %vm1076, %v931, %v963
        %v1133 = vsel %vm1076, %v933, %v965
        %v1134 = vsel %vm1076, %v935, %v967
        %v1135 = vsel %vm1076, %v937, %v969
        %v1136 = vsel %vm1076, %v939, %v971
        %v1137 = vsel %vm1076, %v941, %v973
        %v1138 = vsel %vm1076, %v943, %v975
        %v1139 = vsel %vm1076, %v945, %v977
        %v1140 = vsel %vm1076, %v947, %v979
        %v1141 = vsel %vm1076, %v885, %v917
        %v1142 = vsel %vm1076, %v887, %v919
        %v1143 = vsel %vm1076, %v889, %v921
        %v1144 = vsel %vm1076, %v891, %v923
        %v1145 = vsel %vm1076, %v893, %v925
        %v1146 = vsel %vm1076, %v895, %v927
        %v1147 = vsel %vm1076, %v897, %v929
        %v1148 = vsel %vm1076, %v899, %v931
        %v1149 = vsel %vm1076, %v901, %v933
        %v1150 = vsel %vm1076, %v903, %v935
        %v1151 = vsel %vm1076, %v905, %v937
        %v1152 = vsel %vm1076, %v907, %v939
        %v1153 = vsel %vm1076, %v909, %v941
        %v1154 = vsel %vm1076, %v911, %v943
        %v1155 = vsel %vm1076, %v913, %v945
        %v1156 = vsel %vm1076, %v915, %v947
        %v1157 = vsel %vm1076, %v853, %v885
        %v1158 = vsel %vm1076, %v855, %v887
        %v1159 = vsel %vm1076, %v857, %v889
        %v1160 = vsel %vm1076, %v859, %v891
        %v1161 = vsel %vm1076, %v861, %v893
        %v1162 = vsel %vm1076, %v863, %v895
        %v1163 = vsel %vm1076, %v865, %v897
        %v1164 = vsel %vm1076, %v867, %v899
        %v1165 = vsel %vm1076, %v869, %v901
        %v1166 = vsel %vm1076, %v871, %v903
        %v1167 = vsel %vm1076, %v873, %v905
        %v1168 = vsel %vm1076, %v875, %v907
        %v1169 = vsel %vm1076, %v877, %v909
        %v1170 = vsel %vm1076, %v879, %v911
        %v1171 = vsel %vm1076, %v881, %v913
        %v1172 = vsel %vm1076, %v883, %v915
        %v1173 = vsel %vm1076, %v1045, %v853
        %v1174 = vsel %vm1076, %v1047, %v855
        %v1175 = vsel %vm1076, %v1049, %v857
        %v1176 = vsel %vm1076, %v1051, %v859
        %v1177 = vsel %vm1076, %v1053, %v861
        %v1178 = vsel %vm1076, %v1055, %v863
        %v1179 = vsel %vm1076, %v1057, %v865
        %v1180 = vsel %vm1076, %v1059, %v867
        %v1181 = vsel %vm1076, %v1061, %v869
        %v1182 = vsel %vm1076, %v1063, %v871
        %v1183 = vsel %vm1076, %v1065, %v873
        %v1184 = vsel %vm1076, %v1067, %v875
        %v1185 = vsel %vm1076, %v1069, %v877
        %v1186 = vsel %vm1076, %v1071, %v879
        %v1187 = vsel %vm1076, %v1073, %v881
        %v1188 = vsel %vm1076, %v1075, %v883
        %vm1189 = vcmp.ge.s32.totalorder %v384, 2
        %v1190 = vsel %vm1189, 1, 0
        %v1191 = vperm.slane %v1190, 0
        %v1192 = vperm.slane %v1190, 1
        %v1193 = vperm.slane %v1190, 2
        %v1194 = vperm.slane %v1190, 3
        %v1195 = vperm.slane %v1190, 4
        %v1196 = vperm.slane %v1190, 5
        %v1197 = vperm.slane %v1190, 6
        %vm1198 = vcmp.eq.s32.totalorder %v1191, 1
        %vm1199 = vcmp.eq.s32.totalorder %v1192, 1
        %vm1200 = vcmp.eq.s32.totalorder %v1193, 1
        %vm1201 = vcmp.eq.s32.totalorder %v1194, 1
        %vm1202 = vcmp.eq.s32.totalorder %v1195, 1
        %vm1203 = vcmp.eq.s32.totalorder %v1196, 1
        %vm1204 = vcmp.eq.s32.totalorder %v1197, 1
        %v1205 = vsel %vm1198, %v1173, %v740
        %v1206 = vsel %vm1199, %v1157, %v741
        %v1207 = vsel %vm1200, %v1141, %v742
        %v1208 = vsel %vm1201, %v1125, %v743
        %v1209 = vsel %vm1202, %v1109, %v744
        %v1210 = vsel %vm1203, %v1093, %v745
        %v1211 = vsel %vm1204, %v1077, %v746
        %v1212 = vsel %vm1198, %v1174, %v747
        %v1213 = vsel %vm1199, %v1158, %v748
        %v1214 = vsel %vm1200, %v1142, %v749
        %v1215 = vsel %vm1201, %v1126, %v750
        %v1216 = vsel %vm1202, %v1110, %v751
        %v1217 = vsel %vm1203, %v1094, %v752
        %v1218 = vsel %vm1204, %v1078, %v753
        %v1219 = vsel %vm1198, %v1175, %v754
        %v1220 = vsel %vm1199, %v1159, %v755
        %v1221 = vsel %vm1200, %v1143, %v756
        %v1222 = vsel %vm1201, %v1127, %v757
        %v1223 = vsel %vm1202, %v1111, %v758
        %v1224 = vsel %vm1203, %v1095, %v759
        %v1225 = vsel %vm1204, %v1079, %v760
        %v1226 = vsel %vm1198, %v1176, %v761
        %v1227 = vsel %vm1199, %v1160, %v762
        %v1228 = vsel %vm1200, %v1144, %v763
        %v1229 = vsel %vm1201, %v1128, %v764
        %v1230 = vsel %vm1202, %v1112, %v765
        %v1231 = vsel %vm1203, %v1096, %v766
        %v1232 = vsel %vm1204, %v1080, %v767
        %v1233 = vsel %vm1198, %v1177, %v768
        %v1234 = vsel %vm1199, %v1161, %v769
        %v1235 = vsel %vm1200, %v1145, %v770
        %v1236 = vsel %vm1201, %v1129, %v771
        %v1237 = vsel %vm1202, %v1113, %v772
        %v1238 = vsel %vm1203, %v1097, %v773
        %v1239 = vsel %vm1204, %v1081, %v774
        %v1240 = vsel %vm1198, %v1178, %v775
        %v1241 = vsel %vm1199, %v1162, %v776
        %v1242 = vsel %vm1200, %v1146, %v777
        %v1243 = vsel %vm1201, %v1130, %v778
        %v1244 = vsel %vm1202, %v1114, %v779
        %v1245 = vsel %vm1203, %v1098, %v780
        %v1246 = vsel %vm1204, %v1082, %v781
        %v1247 = vsel %vm1198, %v1179, %v782
        %v1248 = vsel %vm1199, %v1163, %v783
        %v1249 = vsel %vm1200, %v1147, %v784
        %v1250 = vsel %vm1201, %v1131, %v785
        %v1251 = vsel %vm1202, %v1115, %v786
        %v1252 = vsel %vm1203, %v1099, %v787
        %v1253 = vsel %vm1204, %v1083, %v788
        %v1254 = vsel %vm1198, %v1180, %v789
        %v1255 = vsel %vm1199, %v1164, %v790
        %v1256 = vsel %vm1200, %v1148, %v791
        %v1257 = vsel %vm1201, %v1132, %v792
        %v1258 = vsel %vm1202, %v1116, %v793
        %v1259 = vsel %vm1203, %v1100, %v794
        %v1260 = vsel %vm1204, %v1084, %v795
        %v1261 = vsel %vm1198, %v1181, %v796
        %v1262 = vsel %vm1199, %v1165, %v797
        %v1263 = vsel %vm1200, %v1149, %v798
        %v1264 = vsel %vm1201, %v1133, %v799
        %v1265 = vsel %vm1202, %v1117, %v800
        %v1266 = vsel %vm1203, %v1101, %v801
        %v1267 = vsel %vm1204, %v1085, %v802
        %v1268 = vsel %vm1198, %v1182, %v803
        %v1269 = vsel %vm1199, %v1166, %v804
        %v1270 = vsel %vm1200, %v1150, %v805
        %v1271 = vsel %vm1201, %v1134, %v806
        %v1272 = vsel %vm1202, %v1118, %v807
        %v1273 = vsel %vm1203, %v1102, %v808
        %v1274 = vsel %vm1204, %v1086, %v809
        %v1275 = vsel %vm1198, %v1183, %v810
        %v1276 = vsel %vm1199, %v1167, %v811
        %v1277 = vsel %vm1200, %v1151, %v812
        %v1278 = vsel %vm1201, %v1135, %v813
        %v1279 = vsel %vm1202, %v1119, %v814
        %v1280 = vsel %vm1203, %v1103, %v815
        %v1281 = vsel %vm1204, %v1087, %v816
        %v1282 = vsel %vm1198, %v1184, %v817
        %v1283 = vsel %vm1199, %v1168, %v818
        %v1284 = vsel %vm1200, %v1152, %v819
        %v1285 = vsel %vm1201, %v1136, %v820
        %v1286 = vsel %vm1202, %v1120, %v821
        %v1287 = vsel %vm1203, %v1104, %v822
        %v1288 = vsel %vm1204, %v1088, %v823
        %v1289 = vsel %vm1198, %v1185, %v824
        %v1290 = vsel %vm1199, %v1169, %v825
        %v1291 = vsel %vm1200, %v1153, %v826
        %v1292 = vsel %vm1201, %v1137, %v827
        %v1293 = vsel %vm1202, %v1121, %v828
        %v1294 = vsel %vm1203, %v1105, %v829
        %v1295 = vsel %vm1204, %v1089, %v830
        %v1296 = vsel %vm1198, %v1186, %v831
        %v1297 = vsel %vm1199, %v1170, %v832
        %v1298 = vsel %vm1200, %v1154, %v833
        %v1299 = vsel %vm1201, %v1138, %v834
        %v1300 = vsel %vm1202, %v1122, %v835
        %v1301 = vsel %vm1203, %v1106, %v836
        %v1302 = vsel %vm1204, %v1090, %v837
        %v1303 = vsel %vm1198, %v1187, %v838
        %v1304 = vsel %vm1199, %v1171, %v839
        %v1305 = vsel %vm1200, %v1155, %v840
        %v1306 = vsel %vm1201, %v1139, %v841
        %v1307 = vsel %vm1202, %v1123, %v842
        %v1308 = vsel %vm1203, %v1107, %v843
        %v1309 = vsel %vm1204, %v1091, %v844
        %v1310 = vsel %vm1198, %v1188, %v845
        %v1311 = vsel %vm1199, %v1172, %v846
        %v1312 = vsel %vm1200, %v1156, %v847
        %v1313 = vsel %vm1201, %v1140, %v848
        %v1314 = vsel %vm1202, %v1124, %v849
        %v1315 = vsel %vm1203, %v1108, %v850
        %v1316 = vsel %vm1204, %v1092, %v851
        %1317 = vrot.lane.b32.xlu0 %v1205, 4
        %v1318 = vpop.permute.xlu0 %1317
        %1319 = vrot.lane.b32.xlu0 %v1212, 4
        %v1320 = vpop.permute.xlu0 %1319
        %1321 = vrot.lane.b32.xlu0 %v1219, 4
        %v1322 = vpop.permute.xlu0 %1321
        %1323 = vrot.lane.b32.xlu0 %v1226, 4
        %v1324 = vpop.permute.xlu0 %1323
        %1325 = vrot.lane.b32.xlu0 %v1233, 4
        %v1326 = vpop.permute.xlu0 %1325
        %1327 = vrot.lane.b32.xlu0 %v1240, 4
        %v1328 = vpop.permute.xlu0 %1327
        %1329 = vrot.lane.b32.xlu0 %v1247, 4
        %v1330 = vpop.permute.xlu0 %1329
        %1331 = vrot.lane.b32.xlu0 %v1254, 4
        %v1332 = vpop.permute.xlu0 %1331
        %1333 = vrot.lane.b32.xlu0 %v1261, 4
        %v1334 = vpop.permute.xlu0 %1333
        %1335 = vrot.lane.b32.xlu0 %v1268, 4
        %v1336 = vpop.permute.xlu0 %1335
        %1337 = vrot.lane.b32.xlu0 %v1275, 4
        %v1338 = vpop.permute.xlu0 %1337
        %1339 = vrot.lane.b32.xlu0 %v1282, 4
        %v1340 = vpop.permute.xlu0 %1339
        %1341 = vrot.lane.b32.xlu0 %v1289, 4
        %v1342 = vpop.permute.xlu0 %1341
        %1343 = vrot.lane.b32.xlu0 %v1296, 4
        %v1344 = vpop.permute.xlu0 %1343
        %1345 = vrot.lane.b32.xlu0 %v1303, 4
        %v1346 = vpop.permute.xlu0 %1345
        %1347 = vrot.lane.b32.xlu0 %v1310, 4
        %v1348 = vpop.permute.xlu0 %1347
        %1349 = vrot.lane.b32.xlu0 %v1206, 4
        %v1350 = vpop.permute.xlu0 %1349
        %1351 = vrot.lane.b32.xlu0 %v1213, 4
        %v1352 = vpop.permute.xlu0 %1351
        %1353 = vrot.lane.b32.xlu0 %v1220, 4
        %v1354 = vpop.permute.xlu0 %1353
        %1355 = vrot.lane.b32.xlu0 %v1227, 4
        %v1356 = vpop.permute.xlu0 %1355
        %1357 = vrot.lane.b32.xlu0 %v1234, 4
        %v1358 = vpop.permute.xlu0 %1357
        %1359 = vrot.lane.b32.xlu0 %v1241, 4
        %v1360 = vpop.permute.xlu0 %1359
        %1361 = vrot.lane.b32.xlu0 %v1248, 4
        %v1362 = vpop.permute.xlu0 %1361
        %1363 = vrot.lane.b32.xlu0 %v1255, 4
        %v1364 = vpop.permute.xlu0 %1363
        %1365 = vrot.lane.b32.xlu0 %v1262, 4
        %v1366 = vpop.permute.xlu0 %1365
        %1367 = vrot.lane.b32.xlu0 %v1269, 4
        %v1368 = vpop.permute.xlu0 %1367
        %1369 = vrot.lane.b32.xlu0 %v1276, 4
        %v1370 = vpop.permute.xlu0 %1369
        %1371 = vrot.lane.b32.xlu0 %v1283, 4
        %v1372 = vpop.permute.xlu0 %1371
        %1373 = vrot.lane.b32.xlu0 %v1290, 4
        %v1374 = vpop.permute.xlu0 %1373
        %1375 = vrot.lane.b32.xlu0 %v1297, 4
        %v1376 = vpop.permute.xlu0 %1375
        %1377 = vrot.lane.b32.xlu0 %v1304, 4
        %v1378 = vpop.permute.xlu0 %1377
        %1379 = vrot.lane.b32.xlu0 %v1311, 4
        %v1380 = vpop.permute.xlu0 %1379
        %1381 = vrot.lane.b32.xlu0 %v1207, 4
        %v1382 = vpop.permute.xlu0 %1381
        %1383 = vrot.lane.b32.xlu0 %v1214, 4
        %v1384 = vpop.permute.xlu0 %1383
        %1385 = vrot.lane.b32.xlu0 %v1221, 4
        %v1386 = vpop.permute.xlu0 %1385
        %1387 = vrot.lane.b32.xlu0 %v1228, 4
        %v1388 = vpop.permute.xlu0 %1387
        %1389 = vrot.lane.b32.xlu0 %v1235, 4
        %v1390 = vpop.permute.xlu0 %1389
        %1391 = vrot.lane.b32.xlu0 %v1242, 4
        %v1392 = vpop.permute.xlu0 %1391
        %1393 = vrot.lane.b32.xlu0 %v1249, 4
        %v1394 = vpop.permute.xlu0 %1393
        %1395 = vrot.lane.b32.xlu0 %v1256, 4
        %v1396 = vpop.permute.xlu0 %1395
        %1397 = vrot.lane.b32.xlu0 %v1263, 4
        %v1398 = vpop.permute.xlu0 %1397
        %1399 = vrot.lane.b32.xlu0 %v1270, 4
        %v1400 = vpop.permute.xlu0 %1399
        %1401 = vrot.lane.b32.xlu0 %v1277, 4
        %v1402 = vpop.permute.xlu0 %1401
        %1403 = vrot.lane.b32.xlu0 %v1284, 4
        %v1404 = vpop.permute.xlu0 %1403
        %1405 = vrot.lane.b32.xlu0 %v1291, 4
        %v1406 = vpop.permute.xlu0 %1405
        %1407 = vrot.lane.b32.xlu0 %v1298, 4
        %v1408 = vpop.permute.xlu0 %1407
        %1409 = vrot.lane.b32.xlu0 %v1305, 4
        %v1410 = vpop.permute.xlu0 %1409
        %1411 = vrot.lane.b32.xlu0 %v1312, 4
        %v1412 = vpop.permute.xlu0 %1411
        %1413 = vrot.lane.b32.xlu0 %v1208, 4
        %v1414 = vpop.permute.xlu0 %1413
        %1415 = vrot.lane.b32.xlu0 %v1215, 4
        %v1416 = vpop.permute.xlu0 %1415
        %1417 = vrot.lane.b32.xlu0 %v1222, 4
        %v1418 = vpop.permute.xlu0 %1417
        %1419 = vrot.lane.b32.xlu0 %v1229, 4
        %v1420 = vpop.permute.xlu0 %1419
        %1421 = vrot.lane.b32.xlu0 %v1236, 4
        %v1422 = vpop.permute.xlu0 %1421
        %1423 = vrot.lane.b32.xlu0 %v1243, 4
        %v1424 = vpop.permute.xlu0 %1423
        %1425 = vrot.lane.b32.xlu0 %v1250, 4
        %v1426 = vpop.permute.xlu0 %1425
        %1427 = vrot.lane.b32.xlu0 %v1257, 4
        %v1428 = vpop.permute.xlu0 %1427
        %1429 = vrot.lane.b32.xlu0 %v1264, 4
        %v1430 = vpop.permute.xlu0 %1429
        %1431 = vrot.lane.b32.xlu0 %v1271, 4
        %v1432 = vpop.permute.xlu0 %1431
        %1433 = vrot.lane.b32.xlu0 %v1278, 4
        %v1434 = vpop.permute.xlu0 %1433
        %1435 = vrot.lane.b32.xlu0 %v1285, 4
        %v1436 = vpop.permute.xlu0 %1435
        %1437 = vrot.lane.b32.xlu0 %v1292, 4
        %v1438 = vpop.permute.xlu0 %1437
        %1439 = vrot.lane.b32.xlu0 %v1299, 4
        %v1440 = vpop.permute.xlu0 %1439
        %1441 = vrot.lane.b32.xlu0 %v1306, 4
        %v1442 = vpop.permute.xlu0 %1441
        %1443 = vrot.lane.b32.xlu0 %v1313, 4
        %v1444 = vpop.permute.xlu0 %1443
        %1445 = vrot.lane.b32.xlu0 %v1209, 4
        %v1446 = vpop.permute.xlu0 %1445
        %1447 = vrot.lane.b32.xlu0 %v1216, 4
        %v1448 = vpop.permute.xlu0 %1447
        %1449 = vrot.lane.b32.xlu0 %v1223, 4
        %v1450 = vpop.permute.xlu0 %1449
        %1451 = vrot.lane.b32.xlu0 %v1230, 4
        %v1452 = vpop.permute.xlu0 %1451
        %1453 = vrot.lane.b32.xlu0 %v1237, 4
        %v1454 = vpop.permute.xlu0 %1453
        %1455 = vrot.lane.b32.xlu0 %v1244, 4
        %v1456 = vpop.permute.xlu0 %1455
        %1457 = vrot.lane.b32.xlu0 %v1251, 4
        %v1458 = vpop.permute.xlu0 %1457
        %1459 = vrot.lane.b32.xlu0 %v1258, 4
        %v1460 = vpop.permute.xlu0 %1459
        %1461 = vrot.lane.b32.xlu0 %v1265, 4
        %v1462 = vpop.permute.xlu0 %1461
        %1463 = vrot.lane.b32.xlu0 %v1272, 4
        %v1464 = vpop.permute.xlu0 %1463
        %1465 = vrot.lane.b32.xlu0 %v1279, 4
        %v1466 = vpop.permute.xlu0 %1465
        %1467 = vrot.lane.b32.xlu0 %v1286, 4
        %v1468 = vpop.permute.xlu0 %1467
        %1469 = vrot.lane.b32.xlu0 %v1293, 4
        %v1470 = vpop.permute.xlu0 %1469
        %1471 = vrot.lane.b32.xlu0 %v1300, 4
        %v1472 = vpop.permute.xlu0 %1471
        %1473 = vrot.lane.b32.xlu0 %v1307, 4
        %v1474 = vpop.permute.xlu0 %1473
        %1475 = vrot.lane.b32.xlu0 %v1314, 4
        %v1476 = vpop.permute.xlu0 %1475
        %1477 = vrot.lane.b32.xlu0 %v1210, 4
        %v1478 = vpop.permute.xlu0 %1477
        %1479 = vrot.lane.b32.xlu0 %v1217, 4
        %v1480 = vpop.permute.xlu0 %1479
        %1481 = vrot.lane.b32.xlu0 %v1224, 4
        %v1482 = vpop.permute.xlu0 %1481
        %1483 = vrot.lane.b32.xlu0 %v1231, 4
        %v1484 = vpop.permute.xlu0 %1483
        %1485 = vrot.lane.b32.xlu0 %v1238, 4
        %v1486 = vpop.permute.xlu0 %1485
        %1487 = vrot.lane.b32.xlu0 %v1245, 4
        %v1488 = vpop.permute.xlu0 %1487
        %1489 = vrot.lane.b32.xlu0 %v1252, 4
        %v1490 = vpop.permute.xlu0 %1489
        %1491 = vrot.lane.b32.xlu0 %v1259, 4
        %v1492 = vpop.permute.xlu0 %1491
        %1493 = vrot.lane.b32.xlu0 %v1266, 4
        %v1494 = vpop.permute.xlu0 %1493
        %1495 = vrot.lane.b32.xlu0 %v1273, 4
        %v1496 = vpop.permute.xlu0 %1495
        %1497 = vrot.lane.b32.xlu0 %v1280, 4
        %v1498 = vpop.permute.xlu0 %1497
        %1499 = vrot.lane.b32.xlu0 %v1287, 4
        %v1500 = vpop.permute.xlu0 %1499
        %1501 = vrot.lane.b32.xlu0 %v1294, 4
        %v1502 = vpop.permute.xlu0 %1501
        %1503 = vrot.lane.b32.xlu0 %v1301, 4
        %v1504 = vpop.permute.xlu0 %1503
        %1505 = vrot.lane.b32.xlu0 %v1308, 4
        %v1506 = vpop.permute.xlu0 %1505
        %1507 = vrot.lane.b32.xlu0 %v1315, 4
        %v1508 = vpop.permute.xlu0 %1507
        %1509 = vrot.lane.b32.xlu0 %v1211, 4
        %v1510 = vpop.permute.xlu0 %1509
        %1511 = vrot.lane.b32.xlu0 %v1218, 4
        %v1512 = vpop.permute.xlu0 %1511
        %1513 = vrot.lane.b32.xlu0 %v1225, 4
        %v1514 = vpop.permute.xlu0 %1513
        %1515 = vrot.lane.b32.xlu0 %v1232, 4
        %v1516 = vpop.permute.xlu0 %1515
        %1517 = vrot.lane.b32.xlu0 %v1239, 4
        %v1518 = vpop.permute.xlu0 %1517
        %1519 = vrot.lane.b32.xlu0 %v1246, 4
        %v1520 = vpop.permute.xlu0 %1519
        %1521 = vrot.lane.b32.xlu0 %v1253, 4
        %v1522 = vpop.permute.xlu0 %1521
        %1523 = vrot.lane.b32.xlu0 %v1260, 4
        %v1524 = vpop.permute.xlu0 %1523
        %1525 = vrot.lane.b32.xlu0 %v1267, 4
        %v1526 = vpop.permute.xlu0 %1525
        %1527 = vrot.lane.b32.xlu0 %v1274, 4
        %v1528 = vpop.permute.xlu0 %1527
        %1529 = vrot.lane.b32.xlu0 %v1281, 4
        %v1530 = vpop.permute.xlu0 %1529
        %1531 = vrot.lane.b32.xlu0 %v1288, 4
        %v1532 = vpop.permute.xlu0 %1531
        %1533 = vrot.lane.b32.xlu0 %v1295, 4
        %v1534 = vpop.permute.xlu0 %1533
        %1535 = vrot.lane.b32.xlu0 %v1302, 4
        %v1536 = vpop.permute.xlu0 %1535
        %1537 = vrot.lane.b32.xlu0 %v1309, 4
        %v1538 = vpop.permute.xlu0 %1537
        %1539 = vrot.lane.b32.xlu0 %v1316, 4
        %v1540 = vpop.permute.xlu0 %1539
        %vm1541 = vcmp.lt.s32.totalorder %v610, 4
        %v1542 = vsel %vm1541, %v1478, %v1510
        %v1543 = vsel %vm1541, %v1480, %v1512
        %v1544 = vsel %vm1541, %v1482, %v1514
        %v1545 = vsel %vm1541, %v1484, %v1516
        %v1546 = vsel %vm1541, %v1486, %v1518
        %v1547 = vsel %vm1541, %v1488, %v1520
        %v1548 = vsel %vm1541, %v1490, %v1522
        %v1549 = vsel %vm1541, %v1492, %v1524
        %v1550 = vsel %vm1541, %v1494, %v1526
        %v1551 = vsel %vm1541, %v1496, %v1528
        %v1552 = vsel %vm1541, %v1498, %v1530
        %v1553 = vsel %vm1541, %v1500, %v1532
        %v1554 = vsel %vm1541, %v1502, %v1534
        %v1555 = vsel %vm1541, %v1504, %v1536
        %v1556 = vsel %vm1541, %v1506, %v1538
        %v1557 = vsel %vm1541, %v1508, %v1540
        %v1558 = vsel %vm1541, %v1446, %v1478
        %v1559 = vsel %vm1541, %v1448, %v1480
        %v1560 = vsel %vm1541, %v1450, %v1482
        %v1561 = vsel %vm1541, %v1452, %v1484
        %v1562 = vsel %vm1541, %v1454, %v1486
        %v1563 = vsel %vm1541, %v1456, %v1488
        %v1564 = vsel %vm1541, %v1458, %v1490
        %v1565 = vsel %vm1541, %v1460, %v1492
        %v1566 = vsel %vm1541, %v1462, %v1494
        %v1567 = vsel %vm1541, %v1464, %v1496
        %v1568 = vsel %vm1541, %v1466, %v1498
        %v1569 = vsel %vm1541, %v1468, %v1500
        %v1570 = vsel %vm1541, %v1470, %v1502
        %v1571 = vsel %vm1541, %v1472, %v1504
        %v1572 = vsel %vm1541, %v1474, %v1506
        %v1573 = vsel %vm1541, %v1476, %v1508
        %v1574 = vsel %vm1541, %v1414, %v1446
        %v1575 = vsel %vm1541, %v1416, %v1448
        %v1576 = vsel %vm1541, %v1418, %v1450
        %v1577 = vsel %vm1541, %v1420, %v1452
        %v1578 = vsel %vm1541, %v1422, %v1454
        %v1579 = vsel %vm1541, %v1424, %v1456
        %v1580 = vsel %vm1541, %v1426, %v1458
        %v1581 = vsel %vm1541, %v1428, %v1460
        %v1582 = vsel %vm1541, %v1430, %v1462
        %v1583 = vsel %vm1541, %v1432, %v1464
        %v1584 = vsel %vm1541, %v1434, %v1466
        %v1585 = vsel %vm1541, %v1436, %v1468
        %v1586 = vsel %vm1541, %v1438, %v1470
        %v1587 = vsel %vm1541, %v1440, %v1472
        %v1588 = vsel %vm1541, %v1442, %v1474
        %v1589 = vsel %vm1541, %v1444, %v1476
        %v1590 = vsel %vm1541, %v1382, %v1414
        %v1591 = vsel %vm1541, %v1384, %v1416
        %v1592 = vsel %vm1541, %v1386, %v1418
        %v1593 = vsel %vm1541, %v1388, %v1420
        %v1594 = vsel %vm1541, %v1390, %v1422
        %v1595 = vsel %vm1541, %v1392, %v1424
        %v1596 = vsel %vm1541, %v1394, %v1426
        %v1597 = vsel %vm1541, %v1396, %v1428
        %v1598 = vsel %vm1541, %v1398, %v1430
        %v1599 = vsel %vm1541, %v1400, %v1432
        %v1600 = vsel %vm1541, %v1402, %v1434
        %v1601 = vsel %vm1541, %v1404, %v1436
        %v1602 = vsel %vm1541, %v1406, %v1438
        %v1603 = vsel %vm1541, %v1408, %v1440
        %v1604 = vsel %vm1541, %v1410, %v1442
        %v1605 = vsel %vm1541, %v1412, %v1444
        %v1606 = vsel %vm1541, %v1350, %v1382
        %v1607 = vsel %vm1541, %v1352, %v1384
        %v1608 = vsel %vm1541, %v1354, %v1386
        %v1609 = vsel %vm1541, %v1356, %v1388
        %v1610 = vsel %vm1541, %v1358, %v1390
        %v1611 = vsel %vm1541, %v1360, %v1392
        %v1612 = vsel %vm1541, %v1362, %v1394
        %v1613 = vsel %vm1541, %v1364, %v1396
        %v1614 = vsel %vm1541, %v1366, %v1398
        %v1615 = vsel %vm1541, %v1368, %v1400
        %v1616 = vsel %vm1541, %v1370, %v1402
        %v1617 = vsel %vm1541, %v1372, %v1404
        %v1618 = vsel %vm1541, %v1374, %v1406
        %v1619 = vsel %vm1541, %v1376, %v1408
        %v1620 = vsel %vm1541, %v1378, %v1410
        %v1621 = vsel %vm1541, %v1380, %v1412
        %v1622 = vsel %vm1541, %v1318, %v1350
        %v1623 = vsel %vm1541, %v1320, %v1352
        %v1624 = vsel %vm1541, %v1322, %v1354
        %v1625 = vsel %vm1541, %v1324, %v1356
        %v1626 = vsel %vm1541, %v1326, %v1358
        %v1627 = vsel %vm1541, %v1328, %v1360
        %v1628 = vsel %vm1541, %v1330, %v1362
        %v1629 = vsel %vm1541, %v1332, %v1364
        %v1630 = vsel %vm1541, %v1334, %v1366
        %v1631 = vsel %vm1541, %v1336, %v1368
        %v1632 = vsel %vm1541, %v1338, %v1370
        %v1633 = vsel %vm1541, %v1340, %v1372
        %v1634 = vsel %vm1541, %v1342, %v1374
        %v1635 = vsel %vm1541, %v1344, %v1376
        %v1636 = vsel %vm1541, %v1346, %v1378
        %v1637 = vsel %vm1541, %v1348, %v1380
        %v1638 = vsel %vm1541, %v1510, %v1318
        %v1639 = vsel %vm1541, %v1512, %v1320
        %v1640 = vsel %vm1541, %v1514, %v1322
        %v1641 = vsel %vm1541, %v1516, %v1324
        %v1642 = vsel %vm1541, %v1518, %v1326
        %v1643 = vsel %vm1541, %v1520, %v1328
        %v1644 = vsel %vm1541, %v1522, %v1330
        %v1645 = vsel %vm1541, %v1524, %v1332
        %v1646 = vsel %vm1541, %v1526, %v1334
        %v1647 = vsel %vm1541, %v1528, %v1336
        %v1648 = vsel %vm1541, %v1530, %v1338
        %v1649 = vsel %vm1541, %v1532, %v1340
        %v1650 = vsel %vm1541, %v1534, %v1342
        %v1651 = vsel %vm1541, %v1536, %v1344
        %v1652 = vsel %vm1541, %v1538, %v1346
        %v1653 = vsel %vm1541, %v1540, %v1348
        %vm1654 = vcmp.ge.s32.totalorder %v384, 4
        %v1655 = vsel %vm1654, 1, 0
        %v1656 = vperm.slane %v1655, 0
        %v1657 = vperm.slane %v1655, 1
        %v1658 = vperm.slane %v1655, 2
        %v1659 = vperm.slane %v1655, 3
        %v1660 = vperm.slane %v1655, 4
        %v1661 = vperm.slane %v1655, 5
        %v1662 = vperm.slane %v1655, 6
        %vm1663 = vcmp.eq.s32.totalorder %v1656, 1
        %vm1664 = vcmp.eq.s32.totalorder %v1657, 1
        %vm1665 = vcmp.eq.s32.totalorder %v1658, 1
        %vm1666 = vcmp.eq.s32.totalorder %v1659, 1
        %vm1667 = vcmp.eq.s32.totalorder %v1660, 1
        %vm1668 = vcmp.eq.s32.totalorder %v1661, 1
        %vm1669 = vcmp.eq.s32.totalorder %v1662, 1
        %v1670 = vsel %vm1663, %v1638, %v1205
        %v1671 = vsel %vm1664, %v1622, %v1206
        %v1672 = vsel %vm1665, %v1606, %v1207
        %v1673 = vsel %vm1666, %v1590, %v1208
        %v1674 = vsel %vm1667, %v1574, %v1209
        %v1675 = vsel %vm1668, %v1558, %v1210
        %v1676 = vsel %vm1669, %v1542, %v1211
        %v1677 = vsel %vm1663, %v1639, %v1212
        %v1678 = vsel %vm1664, %v1623, %v1213
        %v1679 = vsel %vm1665, %v1607, %v1214
        %v1680 = vsel %vm1666, %v1591, %v1215
        %v1681 = vsel %vm1667, %v1575, %v1216
        %v1682 = vsel %vm1668, %v1559, %v1217
        %v1683 = vsel %vm1669, %v1543, %v1218
        %v1684 = vsel %vm1663, %v1640, %v1219
        %v1685 = vsel %vm1664, %v1624, %v1220
        %v1686 = vsel %vm1665, %v1608, %v1221
        %v1687 = vsel %vm1666, %v1592, %v1222
        %v1688 = vsel %vm1667, %v1576, %v1223
        %v1689 = vsel %vm1668, %v1560, %v1224
        %v1690 = vsel %vm1669, %v1544, %v1225
        %v1691 = vsel %vm1663, %v1641, %v1226
        %v1692 = vsel %vm1664, %v1625, %v1227
        %v1693 = vsel %vm1665, %v1609, %v1228
        %v1694 = vsel %vm1666, %v1593, %v1229
        %v1695 = vsel %vm1667, %v1577, %v1230
        %v1696 = vsel %vm1668, %v1561, %v1231
        %v1697 = vsel %vm1669, %v1545, %v1232
        %v1698 = vsel %vm1663, %v1642, %v1233
        %v1699 = vsel %vm1664, %v1626, %v1234
        %v1700 = vsel %vm1665, %v1610, %v1235
        %v1701 = vsel %vm1666, %v1594, %v1236
        %v1702 = vsel %vm1667, %v1578, %v1237
        %v1703 = vsel %vm1668, %v1562, %v1238
        %v1704 = vsel %vm1669, %v1546, %v1239
        %v1705 = vsel %vm1663, %v1643, %v1240
        %v1706 = vsel %vm1664, %v1627, %v1241
        %v1707 = vsel %vm1665, %v1611, %v1242
        %v1708 = vsel %vm1666, %v1595, %v1243
        %v1709 = vsel %vm1667, %v1579, %v1244
        %v1710 = vsel %vm1668, %v1563, %v1245
        %v1711 = vsel %vm1669, %v1547, %v1246
        %v1712 = vsel %vm1663, %v1644, %v1247
        %v1713 = vsel %vm1664, %v1628, %v1248
        %v1714 = vsel %vm1665, %v1612, %v1249
        %v1715 = vsel %vm1666, %v1596, %v1250
        %v1716 = vsel %vm1667, %v1580, %v1251
        %v1717 = vsel %vm1668, %v1564, %v1252
        %v1718 = vsel %vm1669, %v1548, %v1253
        %v1719 = vsel %vm1663, %v1645, %v1254
        %v1720 = vsel %vm1664, %v1629, %v1255
        %v1721 = vsel %vm1665, %v1613, %v1256
        %v1722 = vsel %vm1666, %v1597, %v1257
        %v1723 = vsel %vm1667, %v1581, %v1258
        %v1724 = vsel %vm1668, %v1565, %v1259
        %v1725 = vsel %vm1669, %v1549, %v1260
        %v1726 = vsel %vm1663, %v1646, %v1261
        %v1727 = vsel %vm1664, %v1630, %v1262
        %v1728 = vsel %vm1665, %v1614, %v1263
        %v1729 = vsel %vm1666, %v1598, %v1264
        %v1730 = vsel %vm1667, %v1582, %v1265
        %v1731 = vsel %vm1668, %v1566, %v1266
        %v1732 = vsel %vm1669, %v1550, %v1267
        %v1733 = vsel %vm1663, %v1647, %v1268
        %v1734 = vsel %vm1664, %v1631, %v1269
        %v1735 = vsel %vm1665, %v1615, %v1270
        %v1736 = vsel %vm1666, %v1599, %v1271
        %v1737 = vsel %vm1667, %v1583, %v1272
        %v1738 = vsel %vm1668, %v1567, %v1273
        %v1739 = vsel %vm1669, %v1551, %v1274
        %v1740 = vsel %vm1663, %v1648, %v1275
        %v1741 = vsel %vm1664, %v1632, %v1276
        %v1742 = vsel %vm1665, %v1616, %v1277
        %v1743 = vsel %vm1666, %v1600, %v1278
        %v1744 = vsel %vm1667, %v1584, %v1279
        %v1745 = vsel %vm1668, %v1568, %v1280
        %v1746 = vsel %vm1669, %v1552, %v1281
        %v1747 = vsel %vm1663, %v1649, %v1282
        %v1748 = vsel %vm1664, %v1633, %v1283
        %v1749 = vsel %vm1665, %v1617, %v1284
        %v1750 = vsel %vm1666, %v1601, %v1285
        %v1751 = vsel %vm1667, %v1585, %v1286
        %v1752 = vsel %vm1668, %v1569, %v1287
        %v1753 = vsel %vm1669, %v1553, %v1288
        %v1754 = vsel %vm1663, %v1650, %v1289
        %v1755 = vsel %vm1664, %v1634, %v1290
        %v1756 = vsel %vm1665, %v1618, %v1291
        %v1757 = vsel %vm1666, %v1602, %v1292
        %v1758 = vsel %vm1667, %v1586, %v1293
        %v1759 = vsel %vm1668, %v1570, %v1294
        %v1760 = vsel %vm1669, %v1554, %v1295
        %v1761 = vsel %vm1663, %v1651, %v1296
        %v1762 = vsel %vm1664, %v1635, %v1297
        %v1763 = vsel %vm1665, %v1619, %v1298
        %v1764 = vsel %vm1666, %v1603, %v1299
        %v1765 = vsel %vm1667, %v1587, %v1300
        %v1766 = vsel %vm1668, %v1571, %v1301
        %v1767 = vsel %vm1669, %v1555, %v1302
        %v1768 = vsel %vm1663, %v1652, %v1303
        %v1769 = vsel %vm1664, %v1636, %v1304
        %v1770 = vsel %vm1665, %v1620, %v1305
        %v1771 = vsel %vm1666, %v1604, %v1306
        %v1772 = vsel %vm1667, %v1588, %v1307
        %v1773 = vsel %vm1668, %v1572, %v1308
        %v1774 = vsel %vm1669, %v1556, %v1309
        %v1775 = vsel %vm1663, %v1653, %v1310
        %v1776 = vsel %vm1664, %v1637, %v1311
        %v1777 = vsel %vm1665, %v1621, %v1312
        %v1778 = vsel %vm1666, %v1605, %v1313
        %v1779 = vsel %vm1667, %v1589, %v1314
        %v1780 = vsel %vm1668, %v1573, %v1315
        %v1781 = vsel %vm1669, %v1557, %v1316
        %v1782 = vsub.f32 %v1670, %v272
        %v1783 = vsub.f32 %v1671, %v273
        %v1784 = vsub.f32 %v1672, %v274
        %v1785 = vsub.f32 %v1673, %v275
        %v1786 = vsub.f32 %v1674, %v276
        %v1787 = vsub.f32 %v1675, %v277
        %v1788 = vsub.f32 %v1676, %v278
        %v1789 = vsub.f32 %v1677, %v279
        %v1790 = vsub.f32 %v1678, %v280
        %v1791 = vsub.f32 %v1679, %v281
        %v1792 = vsub.f32 %v1680, %v282
        %v1793 = vsub.f32 %v1681, %v283
        %v1794 = vsub.f32 %v1682, %v284
        %v1795 = vsub.f32 %v1683, %v285
        %v1796 = vsub.f32 %v1684, %v286
        %v1797 = vsub.f32 %v1685, %v287
        %v1798 = vsub.f32 %v1686, %v288
        %v1799 = vsub.f32 %v1687, %v289
        %v1800 = vsub.f32 %v1688, %v290
        %v1801 = vsub.f32 %v1689, %v291
        %v1802 = vsub.f32 %v1690, %v292
        %v1803 = vsub.f32 %v1691, %v293
        %v1804 = vsub.f32 %v1692, %v294
        %v1805 = vsub.f32 %v1693, %v295
        %v1806 = vsub.f32 %v1694, %v296
        %v1807 = vsub.f32 %v1695, %v297
        %v1808 = vsub.f32 %v1696, %v298
        %v1809 = vsub.f32 %v1697, %v299
        %v1810 = vsub.f32 %v1698, %v300
        %v1811 = vsub.f32 %v1699, %v301
        %v1812 = vsub.f32 %v1700, %v302
        %v1813 = vsub.f32 %v1701, %v303
        %v1814 = vsub.f32 %v1702, %v304
        %v1815 = vsub.f32 %v1703, %v305
        %v1816 = vsub.f32 %v1704, %v306
        %v1817 = vsub.f32 %v1705, %v307
        %v1818 = vsub.f32 %v1706, %v308
        %v1819 = vsub.f32 %v1707, %v309
        %v1820 = vsub.f32 %v1708, %v310
        %v1821 = vsub.f32 %v1709, %v311
        %v1822 = vsub.f32 %v1710, %v312
        %v1823 = vsub.f32 %v1711, %v313
        %v1824 = vsub.f32 %v1712, %v314
        %v1825 = vsub.f32 %v1713, %v315
        %v1826 = vsub.f32 %v1714, %v316
        %v1827 = vsub.f32 %v1715, %v317
        %v1828 = vsub.f32 %v1716, %v318
        %v1829 = vsub.f32 %v1717, %v319
        %v1830 = vsub.f32 %v1718, %v320
        %v1831 = vsub.f32 %v1719, %v321
        %v1832 = vsub.f32 %v1720, %v322
        %v1833 = vsub.f32 %v1721, %v323
        %v1834 = vsub.f32 %v1722, %v324
        %v1835 = vsub.f32 %v1723, %v325
        %v1836 = vsub.f32 %v1724, %v326
        %v1837 = vsub.f32 %v1725, %v327
        %v1838 = vsub.f32 %v1726, %v328
        %v1839 = vsub.f32 %v1727, %v329
        %v1840 = vsub.f32 %v1728, %v330
        %v1841 = vsub.f32 %v1729, %v331
        %v1842 = vsub.f32 %v1730, %v332
        %v1843 = vsub.f32 %v1731, %v333
        %v1844 = vsub.f32 %v1732, %v334
        %v1845 = vsub.f32 %v1733, %v335
        %v1846 = vsub.f32 %v1734, %v336
        %v1847 = vsub.f32 %v1735, %v337
        %v1848 = vsub.f32 %v1736, %v338
        %v1849 = vsub.f32 %v1737, %v339
        %v1850 = vsub.f32 %v1738, %v340
        %v1851 = vsub.f32 %v1739, %v341
        %v1852 = vsub.f32 %v1740, %v342
        %v1853 = vsub.f32 %v1741, %v343
        %v1854 = vsub.f32 %v1742, %v344
        %v1855 = vsub.f32 %v1743, %v345
        %v1856 = vsub.f32 %v1744, %v346
        %v1857 = vsub.f32 %v1745, %v347
        %v1858 = vsub.f32 %v1746, %v348
        %v1859 = vsub.f32 %v1747, %v349
        %v1860 = vsub.f32 %v1748, %v350
        %v1861 = vsub.f32 %v1749, %v351
        %v1862 = vsub.f32 %v1750, %v352
        %v1863 = vsub.f32 %v1751, %v353
        %v1864 = vsub.f32 %v1752, %v354
        %v1865 = vsub.f32 %v1753, %v355
        %v1866 = vsub.f32 %v1754, %v356
        %v1867 = vsub.f32 %v1755, %v357
        %v1868 = vsub.f32 %v1756, %v358
        %v1869 = vsub.f32 %v1757, %v359
        %v1870 = vsub.f32 %v1758, %v360
        %v1871 = vsub.f32 %v1759, %v361
        %v1872 = vsub.f32 %v1760, %v362
        %v1873 = vsub.f32 %v1761, %v363
        %v1874 = vsub.f32 %v1762, %v364
        %v1875 = vsub.f32 %v1763, %v365
        %v1876 = vsub.f32 %v1764, %v366
        %v1877 = vsub.f32 %v1765, %v367
        %v1878 = vsub.f32 %v1766, %v368
        %v1879 = vsub.f32 %v1767, %v369
        %v1880 = vsub.f32 %v1768, %v370
        %v1881 = vsub.f32 %v1769, %v371
        %v1882 = vsub.f32 %v1770, %v372
        %v1883 = vsub.f32 %v1771, %v373
        %v1884 = vsub.f32 %v1772, %v374
        %v1885 = vsub.f32 %v1773, %v375
        %v1886 = vsub.f32 %v1774, %v376
        %v1887 = vsub.f32 %v1775, %v377
        %v1888 = vsub.f32 %v1776, %v378
        %v1889 = vsub.f32 %v1777, %v379
        %v1890 = vsub.f32 %v1778, %v380
        %v1891 = vsub.f32 %v1779, %v381
        %v1892 = vsub.f32 %v1780, %v382
        %v1893 = vsub.f32 %v1781, %v383
        %v1894 = vadd.f32 %v1782, 1e-06
        %v1895 = vadd.f32 %v1783, 1e-06
        %v1896 = vadd.f32 %v1784, 1e-06
        %v1897 = vadd.f32 %v1785, 1e-06
        %v1898 = vadd.f32 %v1786, 1e-06
        %v1899 = vadd.f32 %v1787, 1e-06
        %v1900 = vadd.f32 %v1788, 1e-06
        %v1901 = vadd.f32 %v1789, 1e-06
        %v1902 = vadd.f32 %v1790, 1e-06
        %v1903 = vadd.f32 %v1791, 1e-06
        %v1904 = vadd.f32 %v1792, 1e-06
        %v1905 = vadd.f32 %v1793, 1e-06
        %v1906 = vadd.f32 %v1794, 1e-06
        %v1907 = vadd.f32 %v1795, 1e-06
        %v1908 = vadd.f32 %v1796, 1e-06
        %v1909 = vadd.f32 %v1797, 1e-06
        %v1910 = vadd.f32 %v1798, 1e-06
        %v1911 = vadd.f32 %v1799, 1e-06
        %v1912 = vadd.f32 %v1800, 1e-06
        %v1913 = vadd.f32 %v1801, 1e-06
        %v1914 = vadd.f32 %v1802, 1e-06
        %v1915 = vadd.f32 %v1803, 1e-06
        %v1916 = vadd.f32 %v1804, 1e-06
        %v1917 = vadd.f32 %v1805, 1e-06
        %v1918 = vadd.f32 %v1806, 1e-06
        %v1919 = vadd.f32 %v1807, 1e-06
        %v1920 = vadd.f32 %v1808, 1e-06
        %v1921 = vadd.f32 %v1809, 1e-06
        %v1922 = vadd.f32 %v1810, 1e-06
        %v1923 = vadd.f32 %v1811, 1e-06
        %v1924 = vadd.f32 %v1812, 1e-06
        %v1925 = vadd.f32 %v1813, 1e-06
        %v1926 = vadd.f32 %v1814, 1e-06
        %v1927 = vadd.f32 %v1815, 1e-06
        %v1928 = vadd.f32 %v1816, 1e-06
        %v1929 = vadd.f32 %v1817, 1e-06
        %v1930 = vadd.f32 %v1818, 1e-06
        %v1931 = vadd.f32 %v1819, 1e-06
        %v1932 = vadd.f32 %v1820, 1e-06
        %v1933 = vadd.f32 %v1821, 1e-06
        %v1934 = vadd.f32 %v1822, 1e-06
        %v1935 = vadd.f32 %v1823, 1e-06
        %v1936 = vadd.f32 %v1824, 1e-06
        %v1937 = vadd.f32 %v1825, 1e-06
        %v1938 = vadd.f32 %v1826, 1e-06
        %v1939 = vadd.f32 %v1827, 1e-06
        %v1940 = vadd.f32 %v1828, 1e-06
        %v1941 = vadd.f32 %v1829, 1e-06
        %v1942 = vadd.f32 %v1830, 1e-06
        %v1943 = vadd.f32 %v1831, 1e-06
        %v1944 = vadd.f32 %v1832, 1e-06
        %v1945 = vadd.f32 %v1833, 1e-06
        %v1946 = vadd.f32 %v1834, 1e-06
        %v1947 = vadd.f32 %v1835, 1e-06
        %v1948 = vadd.f32 %v1836, 1e-06
        %v1949 = vadd.f32 %v1837, 1e-06
        %v1950 = vadd.f32 %v1838, 1e-06
        %v1951 = vadd.f32 %v1839, 1e-06
        %v1952 = vadd.f32 %v1840, 1e-06
        %v1953 = vadd.f32 %v1841, 1e-06
        %v1954 = vadd.f32 %v1842, 1e-06
        %v1955 = vadd.f32 %v1843, 1e-06
        %v1956 = vadd.f32 %v1844, 1e-06
        %v1957 = vadd.f32 %v1845, 1e-06
        %v1958 = vadd.f32 %v1846, 1e-06
        %v1959 = vadd.f32 %v1847, 1e-06
        %v1960 = vadd.f32 %v1848, 1e-06
        %v1961 = vadd.f32 %v1849, 1e-06
        %v1962 = vadd.f32 %v1850, 1e-06
        %v1963 = vadd.f32 %v1851, 1e-06
        %v1964 = vadd.f32 %v1852, 1e-06
        %v1965 = vadd.f32 %v1853, 1e-06
        %v1966 = vadd.f32 %v1854, 1e-06
        %v1967 = vadd.f32 %v1855, 1e-06
        %v1968 = vadd.f32 %v1856, 1e-06
        %v1969 = vadd.f32 %v1857, 1e-06
        %v1970 = vadd.f32 %v1858, 1e-06
        %v1971 = vadd.f32 %v1859, 1e-06
        %v1972 = vadd.f32 %v1860, 1e-06
        %v1973 = vadd.f32 %v1861, 1e-06
        %v1974 = vadd.f32 %v1862, 1e-06
        %v1975 = vadd.f32 %v1863, 1e-06
        %v1976 = vadd.f32 %v1864, 1e-06
        %v1977 = vadd.f32 %v1865, 1e-06
        %v1978 = vadd.f32 %v1866, 1e-06
        %v1979 = vadd.f32 %v1867, 1e-06
        %v1980 = vadd.f32 %v1868, 1e-06
        %v1981 = vadd.f32 %v1869, 1e-06
        %v1982 = vadd.f32 %v1870, 1e-06
        %v1983 = vadd.f32 %v1871, 1e-06
        %v1984 = vadd.f32 %v1872, 1e-06
        %v1985 = vadd.f32 %v1873, 1e-06
        %v1986 = vadd.f32 %v1874, 1e-06
        %v1987 = vadd.f32 %v1875, 1e-06
        %v1988 = vadd.f32 %v1876, 1e-06
        %v1989 = vadd.f32 %v1877, 1e-06
        %v1990 = vadd.f32 %v1878, 1e-06
        %v1991 = vadd.f32 %v1879, 1e-06
        %v1992 = vadd.f32 %v1880, 1e-06
        %v1993 = vadd.f32 %v1881, 1e-06
        %v1994 = vadd.f32 %v1882, 1e-06
        %v1995 = vadd.f32 %v1883, 1e-06
        %v1996 = vadd.f32 %v1884, 1e-06
        %v1997 = vadd.f32 %v1885, 1e-06
        %v1998 = vadd.f32 %v1886, 1e-06
        %v1999 = vadd.f32 %v1887, 1e-06
        %v2000 = vadd.f32 %v1888, 1e-06
        %v2001 = vadd.f32 %v1889, 1e-06
        %v2002 = vadd.f32 %v1890, 1e-06
        %v2003 = vadd.f32 %v1891, 1e-06
        %v2004 = vadd.f32 %v1892, 1e-06
        %v2005 = vadd.f32 %v1893, 1e-06
        %v2006 = vld [vmem:[#allocation2] sm:$0xff]
        %v2007 = vmul.f32 %v1894, %v1894
        %v2008 = vmul.f32 %v1895, %v1895
        %v2009 = vmul.f32 %v1896, %v1896
        %v2010 = vmul.f32 %v1897, %v1897
        %v2011 = vmul.f32 %v1898, %v1898
        %v2012 = vmul.f32 %v1899, %v1899
        %v2013 = vmul.f32 %v1900, %v1900
        %v2014 = vmul.f32 %v1901, %v1901
        %v2015 = vmul.f32 %v1902, %v1902
        %v2016 = vmul.f32 %v1903, %v1903
        %v2017 = vmul.f32 %v1904, %v1904
        %v2018 = vmul.f32 %v1905, %v1905
        %v2019 = vmul.f32 %v1906, %v1906
        %v2020 = vmul.f32 %v1907, %v1907
        %v2021 = vmul.f32 %v1908, %v1908
        %v2022 = vmul.f32 %v1909, %v1909
        %v2023 = vmul.f32 %v1910, %v1910
        %v2024 = vmul.f32 %v1911, %v1911
        %v2025 = vmul.f32 %v1912, %v1912
        %v2026 = vmul.f32 %v1913, %v1913
        %v2027 = vmul.f32 %v1914, %v1914
        %v2028 = vmul.f32 %v1915, %v1915
        %v2029 = vmul.f32 %v1916, %v1916
        %v2030 = vmul.f32 %v1917, %v1917
        %v2031 = vmul.f32 %v1918, %v1918
        %v2032 = vmul.f32 %v1919, %v1919
        %v2033 = vmul.f32 %v1920, %v1920
        %v2034 = vmul.f32 %v1921, %v1921
        %v2035 = vmul.f32 %v1922, %v1922
        %v2036 = vmul.f32 %v1923, %v1923
        %v2037 = vmul.f32 %v1924, %v1924
        %v2038 = vmul.f32 %v1925, %v1925
        %v2039 = vmul.f32 %v1926, %v1926
        %v2040 = vmul.f32 %v1927, %v1927
        %v2041 = vmul.f32 %v1928, %v1928
        %v2042 = vmul.f32 %v1929, %v1929
        %v2043 = vmul.f32 %v1930, %v1930
        %v2044 = vmul.f32 %v1931, %v1931
        %v2045 = vmul.f32 %v1932, %v1932
        %v2046 = vmul.f32 %v1933, %v1933
        %v2047 = vmul.f32 %v1934, %v1934
        %v2048 = vmul.f32 %v1935, %v1935
        %v2049 = vmul.f32 %v1936, %v1936
        %v2050 = vmul.f32 %v1937, %v1937
        %v2051 = vmul.f32 %v1938, %v1938
        %v2052 = vmul.f32 %v1939, %v1939
        %v2053 = vmul.f32 %v1940, %v1940
        %v2054 = vmul.f32 %v1941, %v1941
        %v2055 = vmul.f32 %v1942, %v1942
        %v2056 = vmul.f32 %v1943, %v1943
        %v2057 = vmul.f32 %v1944, %v1944
        %v2058 = vmul.f32 %v1945, %v1945
        %v2059 = vmul.f32 %v1946, %v1946
        %v2060 = vmul.f32 %v1947, %v1947
        %v2061 = vmul.f32 %v1948, %v1948
        %v2062 = vmul.f32 %v1949, %v1949
        %v2063 = vmul.f32 %v1950, %v1950
        %v2064 = vmul.f32 %v1951, %v1951
        %v2065 = vmul.f32 %v1952, %v1952
        %v2066 = vmul.f32 %v1953, %v1953
        %v2067 = vmul.f32 %v1954, %v1954
        %v2068 = vmul.f32 %v1955, %v1955
        %v2069 = vmul.f32 %v1956, %v1956
        %v2070 = vmul.f32 %v1957, %v1957
        %v2071 = vmul.f32 %v1958, %v1958
        %v2072 = vmul.f32 %v1959, %v1959
        %v2073 = vmul.f32 %v1960, %v1960
        %v2074 = vmul.f32 %v1961, %v1961
        %v2075 = vmul.f32 %v1962, %v1962
        %v2076 = vmul.f32 %v1963, %v1963
        %v2077 = vmul.f32 %v1964, %v1964
        %v2078 = vmul.f32 %v1965, %v1965
        %v2079 = vmul.f32 %v1966, %v1966
        %v2080 = vmul.f32 %v1967, %v1967
        %v2081 = vmul.f32 %v1968, %v1968
        %v2082 = vmul.f32 %v1969, %v1969
        %v2083 = vmul.f32 %v1970, %v1970
        %v2084 = vmul.f32 %v1971, %v1971
        %v2085 = vmul.f32 %v1972, %v1972
        %v2086 = vmul.f32 %v1973, %v1973
        %v2087 = vmul.f32 %v1974, %v1974
        %v2088 = vmul.f32 %v1975, %v1975
        %v2089 = vmul.f32 %v1976, %v1976
        %v2090 = vmul.f32 %v1977, %v1977
        %v2091 = vmul.f32 %v1978, %v1978
        %v2092 = vmul.f32 %v1979, %v1979
        %v2093 = vmul.f32 %v1980, %v1980
        %v2094 = vmul.f32 %v1981, %v1981
        %v2095 = vmul.f32 %v1982, %v1982
        %v2096 = vmul.f32 %v1983, %v1983
        %v2097 = vmul.f32 %v1984, %v1984
        %v2098 = vmul.f32 %v1985, %v1985
        %v2099 = vmul.f32 %v1986, %v1986
        %v2100 = vmul.f32 %v1987, %v1987
        %v2101 = vmul.f32 %v1988, %v1988
        %v2102 = vmul.f32 %v1989, %v1989
        %v2103 = vmul.f32 %v1990, %v1990
        %v2104 = vmul.f32 %v1991, %v1991
        %v2105 = vmul.f32 %v1992, %v1992
        %v2106 = vmul.f32 %v1993, %v1993
        %v2107 = vmul.f32 %v1994, %v1994
        %v2108 = vmul.f32 %v1995, %v1995
        %v2109 = vmul.f32 %v1996, %v1996
        %v2110 = vmul.f32 %v1997, %v1997
        %v2111 = vmul.f32 %v1998, %v1998
        %v2112 = vmul.f32 %v1999, %v1999
        %v2113 = vmul.f32 %v2000, %v2000
        %v2114 = vmul.f32 %v2001, %v2001
        %v2115 = vmul.f32 %v2002, %v2002
        %v2116 = vmul.f32 %v2003, %v2003
        %v2117 = vmul.f32 %v2004, %v2004
        %v2118 = vmul.f32 %v2005, %v2005
        %v2119 = vadd.f32 %v2007, %v2014
        %v2120 = vadd.f32 %v2119, %v2021
        %v2121 = vadd.f32 %v2120, %v2028
        %v2122 = vadd.f32 %v2121, %v2035
        %v2123 = vadd.f32 %v2122, %v2042
        %v2124 = vadd.f32 %v2123, %v2049
        %v2125 = vadd.f32 %v2124, %v2056
        %v2126 = vadd.f32 %v2125, %v2063
        %v2127 = vadd.f32 %v2126, %v2070
        %v2128 = vadd.f32 %v2127, %v2077
        %v2129 = vadd.f32 %v2128, %v2084
        %v2130 = vadd.f32 %v2129, %v2091
        %v2131 = vadd.f32 %v2130, %v2098
        %v2132 = vadd.f32 %v2131, %v2105
        %v2133 = vadd.f32 %v2132, %v2112
        %v2134 = vrot.slane %v2133, 4
        %v2135 = vadd.f32 %v2133, %v2134
        %v2136 = vrot.slane %v2135, 2
        %v2137 = vadd.f32 %v2135, %v2136
        %v2138 = vrot.slane %v2137, 1
        %v2139 = vadd.f32 %v2137, %v2138
        %v2140 = vadd.f32 %v2008, %v2015
        %v2141 = vadd.f32 %v2140, %v2022
        %v2142 = vadd.f32 %v2141, %v2029
        %v2143 = vadd.f32 %v2142, %v2036
        %v2144 = vadd.f32 %v2143, %v2043
        %v2145 = vadd.f32 %v2144, %v2050
        %v2146 = vadd.f32 %v2145, %v2057
        %v2147 = vadd.f32 %v2146, %v2064
        %v2148 = vadd.f32 %v2147, %v2071
        %v2149 = vadd.f32 %v2148, %v2078
        %v2150 = vadd.f32 %v2149, %v2085
        %v2151 = vadd.f32 %v2150, %v2092
        %v2152 = vadd.f32 %v2151, %v2099
        %v2153 = vadd.f32 %v2152, %v2106
        %v2154 = vadd.f32 %v2153, %v2113
        %v2155 = vrot.slane %v2154, 4
        %v2156 = vadd.f32 %v2154, %v2155
        %v2157 = vrot.slane %v2156, 2
        %v2158 = vadd.f32 %v2156, %v2157
        %v2159 = vrot.slane %v2158, 1
        %v2160 = vadd.f32 %v2158, %v2159
        %v2161 = vadd.f32 %v2009, %v2016
        %v2162 = vadd.f32 %v2161, %v2023
        %v2163 = vadd.f32 %v2162, %v2030
        %v2164 = vadd.f32 %v2163, %v2037
        %v2165 = vadd.f32 %v2164, %v2044
        %v2166 = vadd.f32 %v2165, %v2051
        %v2167 = vadd.f32 %v2166, %v2058
        %v2168 = vadd.f32 %v2167, %v2065
        %v2169 = vadd.f32 %v2168, %v2072
        %v2170 = vadd.f32 %v2169, %v2079
        %v2171 = vadd.f32 %v2170, %v2086
        %v2172 = vadd.f32 %v2171, %v2093
        %v2173 = vadd.f32 %v2172, %v2100
        %v2174 = vadd.f32 %v2173, %v2107
        %v2175 = vadd.f32 %v2174, %v2114
        %v2176 = vrot.slane %v2175, 4
        %v2177 = vadd.f32 %v2175, %v2176
        %v2178 = vrot.slane %v2177, 2
        %v2179 = vadd.f32 %v2177, %v2178
        %v2180 = vrot.slane %v2179, 1
        %v2181 = vadd.f32 %v2179, %v2180
        %v2182 = vadd.f32 %v2010, %v2017
        %v2183 = vadd.f32 %v2182, %v2024
        %v2184 = vadd.f32 %v2183, %v2031
        %v2185 = vadd.f32 %v2184, %v2038
        %v2186 = vadd.f32 %v2185, %v2045
        %v2187 = vadd.f32 %v2186, %v2052
        %v2188 = vadd.f32 %v2187, %v2059
        %v2189 = vadd.f32 %v2188, %v2066
        %v2190 = vadd.f32 %v2189, %v2073
        %v2191 = vadd.f32 %v2190, %v2080
        %v2192 = vadd.f32 %v2191, %v2087
        %v2193 = vadd.f32 %v2192, %v2094
        %v2194 = vadd.f32 %v2193, %v2101
        %v2195 = vadd.f32 %v2194, %v2108
        %v2196 = vadd.f32 %v2195, %v2115
        %v2197 = vrot.slane %v2196, 4
        %v2198 = vadd.f32 %v2196, %v2197
        %v2199 = vrot.slane %v2198, 2
        %v2200 = vadd.f32 %v2198, %v2199
        %v2201 = vrot.slane %v2200, 1
        %v2202 = vadd.f32 %v2200, %v2201
        %v2203 = vadd.f32 %v2011, %v2018
        %v2204 = vadd.f32 %v2203, %v2025
        %v2205 = vadd.f32 %v2204, %v2032
        %v2206 = vadd.f32 %v2205, %v2039
        %v2207 = vadd.f32 %v2206, %v2046
        %v2208 = vadd.f32 %v2207, %v2053
        %v2209 = vadd.f32 %v2208, %v2060
        %v2210 = vadd.f32 %v2209, %v2067
        %v2211 = vadd.f32 %v2210, %v2074
        %v2212 = vadd.f32 %v2211, %v2081
        %v2213 = vadd.f32 %v2212, %v2088
        %v2214 = vadd.f32 %v2213, %v2095
        %v2215 = vadd.f32 %v2214, %v2102
        %v2216 = vadd.f32 %v2215, %v2109
        %v2217 = vadd.f32 %v2216, %v2116
        %v2218 = vrot.slane %v2217, 4
        %v2219 = vadd.f32 %v2217, %v2218
        %v2220 = vrot.slane %v2219, 2
        %v2221 = vadd.f32 %v2219, %v2220
        %v2222 = vrot.slane %v2221, 1
        %v2223 = vadd.f32 %v2221, %v2222
        %v2224 = vadd.f32 %v2012, %v2019
        %v2225 = vadd.f32 %v2224, %v2026
        %v2226 = vadd.f32 %v2225, %v2033
        %v2227 = vadd.f32 %v2226, %v2040
        %v2228 = vadd.f32 %v2227, %v2047
        %v2229 = vadd.f32 %v2228, %v2054
        %v2230 = vadd.f32 %v2229, %v2061
        %v2231 = vadd.f32 %v2230, %v2068
        %v2232 = vadd.f32 %v2231, %v2075
        %v2233 = vadd.f32 %v2232, %v2082
        %v2234 = vadd.f32 %v2233, %v2089
        %v2235 = vadd.f32 %v2234, %v2096
        %v2236 = vadd.f32 %v2235, %v2103
        %v2237 = vadd.f32 %v2236, %v2110
        %v2238 = vadd.f32 %v2237, %v2117
        %v2239 = vrot.slane %v2238, 4
        %v2240 = vadd.f32 %v2238, %v2239
        %v2241 = vrot.slane %v2240, 2
        %v2242 = vadd.f32 %v2240, %v2241
        %v2243 = vrot.slane %v2242, 1
        %v2244 = vadd.f32 %v2242, %v2243
        %v2245 = vadd.f32 %v2013, %v2020
        %v2246 = vadd.f32 %v2245, %v2027
        %v2247 = vadd.f32 %v2246, %v2034
        %v2248 = vadd.f32 %v2247, %v2041
        %v2249 = vadd.f32 %v2248, %v2048
        %v2250 = vadd.f32 %v2249, %v2055
        %v2251 = vadd.f32 %v2250, %v2062
        %v2252 = vadd.f32 %v2251, %v2069
        %v2253 = vadd.f32 %v2252, %v2076
        %v2254 = vadd.f32 %v2253, %v2083
        %v2255 = vadd.f32 %v2254, %v2090
        %v2256 = vadd.f32 %v2255, %v2097
        %v2257 = vadd.f32 %v2256, %v2104
        %v2258 = vadd.f32 %v2257, %v2111
        %v2259 = vadd.f32 %v2258, %v2118
        %v2260 = vrot.slane %v2259, 4
        %v2261 = vadd.f32 %v2259, %v2260
        %v2262 = vrot.slane %v2261, 2
        %v2263 = vadd.f32 %v2261, %v2262
        %v2264 = vrot.slane %v2263, 1
        %v2265 = vadd.f32 %v2263, %v2264
        %v2273 = vrot.slane %v2160, 7
        %v2274 = vrot.slane %v2181, 6
        %v2275 = vrot.slane %v2202, 5
        %v2276 = vrot.slane %v2223, 4
        %v2277 = vrot.slane %v2244, 3
        %v2278 = vrot.slane %v2265, 2
        %vm2279 = vcmask 1040384
        %v2280 = vsel %vm2279, %v2139, %v2273
        %vm2281 = vcmask 1042434
        %v2282 = vsel %vm2281, %v2274, %v2275
        %vm2283 = vcmask 1041408
        %v2284 = vsel %vm2283, %v2280, %v2282
        %vm2285 = vcmask 1044484
        %v2286 = vsel %vm2285, %v2276, %v2277
        %vm2287 = vcmask 1045508
        %v2288 = vsel %vm2287, %v2286, %v2278
        %vm2289 = vcmask 1043456
        %v2290 = vsel %vm2289, %v2284, %v2288
        %v2292 = vadd.f32 %v2006, %v2290
        %v2293 = vlaneseq
        %vm2294 = vcmp.ge.s32.totalorder %v2293, 0
        %vm2295 = vcmp.lt.s32.totalorder %v2293, 896
        %vm2296 = vmand %vm2294, %vm2295
        %2297 = vst.msk [vmem:[#allocation2] sm:$0x7f] %vm2296, %v2292
        // Predicated region
        $region49: #{tpu_custom_call.1} parent=31 // pred_check
          %p2298 = pneg %p263
        $region50: #{tpu_custom_call.1} parent=31 // pred_check_branch
          %2300 = sbr.rel (%p2298) target = $region52
        $region51: #{tpu_custom_call.1} parent=31 // pred_region
          %v2301 = vld [vmem:[#allocation2] sm:$0xff]
          %v2302 = vmax.f32 %v2301, 0.0
          %v2303 = vrsqrt.pop %v2302
          %v2304 = vmul.f32 %v2303, %v2302
          %v2305 = vmul.f32 %v2304, %v2303
          %v2306 = vmul.f32 0.5, %v2305
          %v2307 = vsub.f32 1.5, %v2306
          %v2308 = vmul.f32 %v2303, %v2307
          %v2309 = vmul.f32 %v2302, %v2308
          %vm2310 = vcmp.eq.f32.partialorder %v2302, inf
          %v2311 = vsel %vm2310, %v2302, %v2309
          %vm2312 = vcmp.eq.f32.partialorder %v2302, 0.0
          %v2313 = vand.u32 %v2302, 2147483648
          %v2314 = vsel %vm2312, %v2313, %v2311
          %v2315 = vsub.f32 0.7, %v2314
          %v2316 = vmax.f32 %v2315, 0.0
          %v2317 = vld [vmem:[%s215] sm:$0xff]
          %vm2318 = vcmp.gt.f32.partialorder %v2317, 0.5
          %v2319 = vmul.f32 %v2316, %v2316
          %v2320 = vsel %vm2318, %v2302, %v2319
          %vm2321 = vcmp.gt.f32.partialorder %v2317, -0.5
          %v2322 = vmul.f32 %v2320, 0.5
          %v2323 = vsel %vm2321, %v2322, 0.0
          %2324 = vst.msk [vmem:[%s258] sm:$0x7f] %vm2296, %v2323
        $region52: #{tpu_custom_call.1} parent=31 // pred_fallthru
          _
        %s2325 = sand.u32 %s116, 1
        %s2326 = scalar_lea.sflag [#allocation5], %s2325
        %s2327 = sand.u32 %s116, 1
        %s2328 = smul.addr %s2327, 7
        %s2329 = scalar_lea.vmem [#allocation9], %s2328
        // Predicated region
        $region53: #{tpu_custom_call.1} parent=31 // pred_check
          %p2330 = pneg %p126
        $region54: #{tpu_custom_call.1} parent=31 // pred_check_branch
          %2332 = sbr.rel (%p2330) target = $region56
        $region55: #{tpu_custom_call.1} parent=31 // pred_region
          %s2333 = smul.u32 7, %s25
          %2335 = vsyncadd %s2326, 0
          %s2336 = scalar_lea.hbm %s3, %s2333
          %s2338 = sshll.u32 %s2329, 4
          %s2339 = int_to_ptr.vmem [resolvable:$true] %s2338
          %s2340 = sshll.u32 %s2336, 4
          %s2341 = int_to_ptr.hbm [resolvable:$true] %s2340
          %2343 = dma.vmem_to_hbm [thread:$0]  %s2339, 112, %s2341, %s2326
        $region56: #{tpu_custom_call.1} parent=31 // pred_fallthru
          _
      $region32: #{tpu_custom_call.1} parent=5 // pred_fallthru
        _
      %p2344 = scmp.le.s32.totalorder 2, %s16
      // Predicated region
      $region57: #{tpu_custom_call.1} parent=5 // pred_check
        %p2345 = pneg %p2344
      $region58: #{tpu_custom_call.1} parent=5 // pred_check_branch
        %2347 = sbr.rel (%p2345) target = $region60
      $region59: #{tpu_custom_call.1} parent=5 // pred_region
        %s2348 = ssub.s32 %s16, 2
        // Predicated region
        $region61: #{tpu_custom_call.1} parent=59 // pred_check
          %p2349 = pneg %p132
        $region62: #{tpu_custom_call.1} parent=59 // pred_check_branch
          %2351 = sbr.rel (%p2349) target = $region64
        $region63: #{tpu_custom_call.1} parent=59 // pred_region
          %s2352 = sand.u32 %s117, 1
          %s2353 = scalar_lea.sflag [#allocation5], %s2352
          %s2354 = sand.u32 %s117, 1
          %s2355 = smul.addr %s2354, 7
          %s2356 = scalar_lea.vmem [#allocation9], %s2355
          %2358 = dma.done %s2353, 112
        $region64: #{tpu_custom_call.1} parent=59 // pred_fallthru
          _
      $region60: #{tpu_custom_call.1} parent=5 // pred_fallthru
        _
    $region6: #{tpu_custom_call.1} parent=1 // loop_footer
      %s20 = sadd.s32 1, %s16
    $region7: #{tpu_custom_call.1} parent=1 // loop_footer_branch
      %15 = sbr.rel target = $region3
    $region8: #{tpu_custom_call.1} parent=1 // loop_exit
      _
    %2359 = vsyncpa [#allocation4], 1
    %s2360 = scalar_lea.sflag [#allocation4], 1
    %2361 = vsyncpa %s2360, 1
    %2362 = vsyncpa [#allocation7], 1
    %2363 = vsyncpa [#allocation5], 1
    %s2364 = scalar_lea.sflag [#allocation5], 1
    %2365 = vsyncpa %s2364, 1

</llo_original>
